<compile_context>
chip_gen: v6e
topology: v6e:2x2x1
jax: 0.10.0
libtpu: 0.0.40
codegen_flags: <defaults>
</compile_context>

<pallas_src>
import functools

import jax
import jax.numpy as jnp
from jax import lax
from jax.experimental import pallas as pl
from jax.experimental.pallas import tpu as pltpu


def _attention_kernel(q_ref, k_ref, v_ref, wq_ref, bq_ref, wk_ref, bk_ref,
                      attn_ref, out_ref, qp_ref, *, inv_temperature):
    # Project the query once per batch element (grid axis 1 iterates T_k tiles
    # within a batch and is marked "arbitrary", so the scratch carry is safe).
    @pl.when(pl.program_id(1) == 0)
    def _():
        q = q_ref[0].astype(jnp.bfloat16)                       # (T_q, q_dim)
        qp = jnp.dot(q, wq_ref[...],
                     preferred_element_type=jnp.float32)        # (T_q, inner)
        qp = (qp + bq_ref[...]) * inv_temperature               # f32 elementwise
        qp_ref[...] = qp.astype(jnp.bfloat16)                   # cached, MXU feed

    # Key projection for this T_k tile.
    k = k_ref[0].astype(jnp.bfloat16)                           # (tk, k_dim)
    kp = jnp.dot(k, wk_ref[...],
                 preferred_element_type=jnp.float32)            # (tk, inner)
    kp = kp + bk_ref[...]

    # score[t_k, t_q] = sum_i kp[t_k, i] * qp[t_q, i]  (1/temperature already
    # folded into qp; contraction expressed directly -> no explicit transpose).
    score = lax.dot_general(
        kp.astype(jnp.bfloat16), qp_ref[...],
        dimension_numbers=(((1,), (1,)), ((), ())),
        preferred_element_type=jnp.float32)                     # (tk, T_q)

    # softmax over T_q, all elementwise math in f32.
    m = jnp.max(score, axis=-1, keepdims=True)
    e = jnp.exp(score - m)
    denom = jnp.sum(e, axis=-1, keepdims=True)
    attn = e * pl.reciprocal(denom, approx=True)                # (tk, T_q)

    # out = attn @ value -> (tk, v_dim), bf16 MXU feed, f32 accumulate.
    out = jnp.dot(attn.astype(jnp.bfloat16), v_ref[0].astype(jnp.bfloat16),
                  preferred_element_type=jnp.float32)

    attn_ref[0] = attn.astype(attn_ref.dtype)
    out_ref[0] = out.astype(out_ref.dtype)


_VMEM_BUDGET_BYTES = 20 * 1024 * 1024   # headroom under the 32 MiB scoped limit


def _choose_tk(T_k, T_q, k_dim, v_dim):
    """Largest T_k tile (multiple of 8) whose double-buffered blocks fit VMEM."""
    for tk in (2048, 1024, 512, 256, 128, 64, 32, 16, 8):
        if tk > T_k:
            continue
        per_step = 2 * tk * (k_dim + T_q + v_dim) * 4   # f32 key/attn/out tiles
        if per_step <= _VMEM_BUDGET_BYTES:
            return tk
    return 8


def dot_product_attention(query, key, value, wq, bq, wk, bk, temperature, *,
                          tk=None):
    """query: (B,T_q,q_dim), key: (B,T_k,k_dim), value: (B,T_q,v_dim)."""
    B, T_q, q_dim = query.shape
    _, T_k, k_dim = key.shape
    _, _, v_dim = value.shape
    inner_dim = wq.shape[1]

    # ---- choose the T_k tile size ------------------------------------------
    if T_k <= 8:
        tk = T_k
    elif tk is None:
        tk = _choose_tk(T_k, T_q, k_dim, v_dim)
    else:
        tk = max(8, min(int(tk), T_k))
        tk -= tk % 8                       # keep sublane (8) alignment

    # Pad T_k to a multiple of tk. Padded rows are independent (softmax is over
    # T_q) and are sliced off afterwards, so they cannot affect valid rows.
    T_k_pad = pl.cdiv(T_k, tk) * tk
    key_p = key
    if T_k_pad != T_k:
        key_p = jnp.pad(key, ((0, 0), (0, T_k_pad - T_k), (0, 0)))
    n_tk = T_k_pad // tk

    # Weights as bf16 MXU feeds (one-time cast); biases stay f32.
    wq_b = wq.astype(jnp.bfloat16)
    wk_b = wk.astype(jnp.bfloat16)
    bq2 = bq.reshape(1, inner_dim).astype(jnp.float32)
    bk2 = bk.reshape(1, inner_dim).astype(jnp.float32)

    kernel = functools.partial(_attention_kernel,
                               inv_temperature=float(1.0 / temperature))

    # NOTE: for very small T / B workloads, packing several batch elements per
    # grid step would further amortize the ~0.35us per-step overhead.
    attn, out = pl.pallas_call(
        kernel,
        out_shape=(
            jax.ShapeDtypeStruct((B, T_k_pad, T_q), jnp.float32),
            jax.ShapeDtypeStruct((B, T_k_pad, v_dim), jnp.float32),
        ),
        grid_spec=pltpu.PrefetchScalarGridSpec(
            num_scalar_prefetch=0,
            grid=(B, n_tk),
            in_specs=[
                pl.BlockSpec((1, T_q, q_dim), lambda b, j: (b, 0, 0)),   # query
                pl.BlockSpec((1, tk, k_dim), lambda b, j: (b, j, 0)),    # key
                pl.BlockSpec((1, T_q, v_dim), lambda b, j: (b, 0, 0)),   # value
                pl.BlockSpec((q_dim, inner_dim), lambda b, j: (0, 0)),   # W_q
                pl.BlockSpec((1, inner_dim), lambda b, j: (0, 0)),       # b_q
                pl.BlockSpec((k_dim, inner_dim), lambda b, j: (0, 0)),   # W_k
                pl.BlockSpec((1, inner_dim), lambda b, j: (0, 0)),       # b_k
            ],
            out_specs=[
                pl.BlockSpec((1, tk, T_q), lambda b, j: (b, j, 0)),      # attn
                pl.BlockSpec((1, tk, v_dim), lambda b, j: (b, j, 0)),    # out
            ],
            scratch_shapes=[
                pltpu.VMEM((T_q, inner_dim), jnp.bfloat16),  # cached qp (scaled)
            ],
        ),
        compiler_params=pltpu.CompilerParams(
            dimension_semantics=("parallel", "arbitrary"),
            vmem_limit_bytes=32 * 1024 * 1024,
        ),
    )(query, key_p, value, wq_b, bq2, wk_b, bk2)

    if T_k_pad != T_k:
        attn = attn[:, :T_k, :]
        out = out[:, :T_k, :]
    return attn, out


def _reference(query, key, value, wq, bq, wk, bk, temperature):
    q = query @ wq + bq
    k = key @ wk + bk
    score = jnp.einsum("bki,bqi->bkq", k, q) / temperature
    attn = jax.nn.softmax(score, axis=-1)
    out = jnp.einsum("bkq,bqv->bkv", attn, value)
    return attn, out


if __name__ == "__main__":
    # Small, module-consistent shapes; T_q / v_dim chosen lane-dense (128) and
    # T_k / tk chosen so the T_k tiling + qp-caching path is exercised.
    B, T_q, T_k = 2, 128, 256
    q_dim, k_dim, v_dim, inner_dim = 32, 32, 128, 64
    temperature = 8.0

    key0 = jax.random.PRNGKey(0)
    ks = jax.random.split(key0, 7)

    query = jax.random.normal(ks[0], (B, T_q, q_dim), dtype=jnp.float32)
    keyx = jax.random.normal(ks[1], (B, T_k, k_dim), dtype=jnp.float32)
    value = jax.random.normal(ks[2], (B, T_q, v_dim), dtype=jnp.float32)

    # Deterministic parameter init (roughly nn.Linear uniform init scale).
    wq = jax.random.uniform(ks[3], (q_dim, inner_dim), jnp.float32,
                            -1.0 / q_dim**0.5, 1.0 / q_dim**0.5)
    bq = jax.random.uniform(ks[4], (inner_dim,), jnp.float32,
                            -1.0 / q_dim**0.5, 1.0 / q_dim**0.5)
    wk = jax.random.uniform(ks[5], (k_dim, inner_dim), jnp.float32,
                            -1.0 / k_dim**0.5, 1.0 / k_dim**0.5)
    bk = jax.random.uniform(ks[6], (inner_dim,), jnp.float32,
                            -1.0 / k_dim**0.5, 1.0 / k_dim**0.5)

    attn, out = dot_product_attention(query, keyx, value, wq, bq, wk, bk,
                                      temperature, tk=128)
    jax.block_until_ready((attn, out))

    attn_ref, out_ref = _reference(query, keyx, value, wq, bq, wk, bk,
                                   temperature)

    # Tolerance accounts for bf16 MXU operands (f32 accumulation) + approx
    # reciprocal; reference is full f32.
    assert attn.shape == (B, T_k, T_q) and out.shape == (B, T_k, v_dim)
    assert jnp.allclose(attn, attn_ref, atol=2e-2, rtol=2e-2)
    assert jnp.allclose(out, out_ref, atol=2e-2, rtol=2e-2)

    print("KERNEL_OK")
</pallas_src>

<mosaic_0001>
module attributes {stable_mosaic.version = 11 : i64} {
  func.func @_attention_kernel(%arg0: i32, %arg1: i32, %arg2: memref<1x128x32xf32, #tpu.memory_space<vmem>>, %arg3: memref<1x128x32xf32, #tpu.memory_space<vmem>>, %arg4: memref<1x128x128xf32, #tpu.memory_space<vmem>>, %arg5: memref<32x64xbf16, #tpu.memory_space<vmem>>, %arg6: memref<1x64xf32, #tpu.memory_space<vmem>>, %arg7: memref<32x64xbf16, #tpu.memory_space<vmem>>, %arg8: memref<1x64xf32, #tpu.memory_space<vmem>>, %arg9: memref<1x128x128xf32, #tpu.memory_space<vmem>>, %arg10: memref<1x128x128xf32, #tpu.memory_space<vmem>>, %arg11: memref<128x64xbf16, #tpu.memory_space<vmem>>) attributes {dimension_semantics = [#tpu.dimension_semantics<parallel>, #tpu.dimension_semantics<arbitrary>], iteration_bounds = array<i64: 2, 2>, scalar_prefetch = 0 : i64, scratch_operands = 1 : i64, tpu.core_type = #tpu.core_type<tc>, window_params = [{transform_indices = @transform_0, window_bounds = array<i64: 1, 128, 32>}, {transform_indices = @transform_1, window_bounds = array<i64: 1, 128, 32>}, {transform_indices = @transform_2, window_bounds = array<i64: 1, 128, 128>}, {pipeline_mode = #tpu.pipeline_mode<synchronous>, transform_indices = @transform_3, window_bounds = array<i64: 32, 64>}, {pipeline_mode = #tpu.pipeline_mode<synchronous>, transform_indices = @transform_4, window_bounds = array<i64: 1, 64>}, {pipeline_mode = #tpu.pipeline_mode<synchronous>, transform_indices = @transform_5, window_bounds = array<i64: 32, 64>}, {pipeline_mode = #tpu.pipeline_mode<synchronous>, transform_indices = @transform_6, window_bounds = array<i64: 1, 64>}, {transform_indices = @transform_7, window_bounds = array<i64: 1, 128, 128>}, {transform_indices = @transform_8, window_bounds = array<i64: 1, 128, 128>}]} {
    %c0_i32 = arith.constant 0 : i32
    %0 = arith.cmpi eq, %arg1, %c0_i32 : i32
    %1 = arith.extui %0 : i1 to i32
    %c0_i32_0 = arith.constant 0 : i32
    %2 = arith.cmpi ne, %1, %c0_i32_0 : i32
    scf.if %2 {
      %c0_22 = arith.constant 0 : index
      %c0_23 = arith.constant 0 : index
      %c0_24 = arith.constant 0 : index
      %35 = vector.load %arg2[%c0_22, %c0_23, %c0_24] : memref<1x128x32xf32, #tpu.memory_space<vmem>>, vector<1x128x32xf32>
      %36 = vector.shape_cast %35 : vector<1x128x32xf32> to vector<128x32xf32>
      %37 = arith.truncf %36 : vector<128x32xf32> to vector<128x32xbf16>
      %c0_25 = arith.constant 0 : index
      %c0_26 = arith.constant 0 : index
      %38 = vector.load %arg5[%c0_25, %c0_26] : memref<32x64xbf16, #tpu.memory_space<vmem>>, vector<32x64xbf16>
      %cst_27 = arith.constant dense<0.000000e+00> : vector<128x64xf32>
      %39 = tpu.matmul %37, %38, %cst_27 {dimension_numbers = #tpu.dot_dimension_numbers<[1], [0], [0], [1], [0, 0, 1, 1], [], []>} : vector<128x32xbf16>, vector<32x64xbf16>, vector<128x64xf32> -> vector<128x64xf32>
      %c0_28 = arith.constant 0 : index
      %c0_29 = arith.constant 0 : index
      %40 = vector.load %arg6[%c0_28, %c0_29] : memref<1x64xf32, #tpu.memory_space<vmem>>, vector<1x64xf32>
      %41 = vector.broadcast %40 : vector<1x64xf32> to vector<128x64xf32>
      %42 = arith.addf %39, %41 : vector<128x64xf32>
      %cst_30 = arith.constant 1.250000e-01 : f32
      %43 = vector.broadcast %cst_30 : f32 to vector<128x64xf32>
      %44 = arith.mulf %42, %43 : vector<128x64xf32>
      %45 = arith.truncf %44 : vector<128x64xf32> to vector<128x64xbf16>
      %c0_31 = arith.constant 0 : index
      %c0_32 = arith.constant 0 : index
      %46 = vector.load %arg11[%c0_31, %c0_32] : memref<128x64xbf16, #tpu.memory_space<vmem>>, vector<128x64xbf16>
      tpu.vector_store %arg11[%c0_31, %c0_32], %45 {strides = array<i32>} : memref<128x64xbf16, #tpu.memory_space<vmem>>, vector<128x64xbf16>,
    } else {
    }
    %c0 = arith.constant 0 : index
    %c0_1 = arith.constant 0 : index
    %c0_2 = arith.constant 0 : index
    %3 = vector.load %arg3[%c0, %c0_1, %c0_2] : memref<1x128x32xf32, #tpu.memory_space<vmem>>, vector<1x128x32xf32>
    %4 = vector.shape_cast %3 : vector<1x128x32xf32> to vector<128x32xf32>
    %5 = arith.truncf %4 : vector<128x32xf32> to vector<128x32xbf16>
    %c0_3 = arith.constant 0 : index
    %c0_4 = arith.constant 0 : index
    %6 = vector.load %arg7[%c0_3, %c0_4] : memref<32x64xbf16, #tpu.memory_space<vmem>>, vector<32x64xbf16>
    %cst = arith.constant dense<0.000000e+00> : vector<128x64xf32>
    %7 = tpu.matmul %5, %6, %cst {dimension_numbers = #tpu.dot_dimension_numbers<[1], [0], [0], [1], [0, 0, 1, 1], [], []>} : vector<128x32xbf16>, vector<32x64xbf16>, vector<128x64xf32> -> vector<128x64xf32>
    %c0_5 = arith.constant 0 : index
    %c0_6 = arith.constant 0 : index
    %8 = vector.load %arg8[%c0_5, %c0_6] : memref<1x64xf32, #tpu.memory_space<vmem>>, vector<1x64xf32>
    %9 = vector.broadcast %8 : vector<1x64xf32> to vector<128x64xf32>
    %10 = arith.addf %7, %9 : vector<128x64xf32>
    %11 = arith.truncf %10 : vector<128x64xf32> to vector<128x64xbf16>
    %c0_7 = arith.constant 0 : index
    %c0_8 = arith.constant 0 : index
    %12 = vector.load %arg11[%c0_7, %c0_8] : memref<128x64xbf16, #tpu.memory_space<vmem>>, vector<128x64xbf16>
    %cst_9 = arith.constant dense<0.000000e+00> : vector<128x128xf32>
    %13 = tpu.matmul %11, %12, %cst_9 {dimension_numbers = #tpu.dot_dimension_numbers<[1], [1], [0], [0], [0, 0, 1, 0], [], []>} : vector<128x64xbf16>, vector<128x64xbf16>, vector<128x128xf32> -> vector<128x128xf32>
    %cst_10 = arith.constant dense<0xFF800000> : vector<128xf32>
    %14 = vector.multi_reduction <maximumf>, %13, %cst_10 [1] : vector<128x128xf32> to vector<128xf32>
    %15 = vector.shape_cast %14 : vector<128xf32> to vector<128x1xf32>
    %16 = vector.broadcast %15 : vector<128x1xf32> to vector<128x128xf32>
    %17 = arith.subf %13, %16 : vector<128x128xf32>
    %18 = math.exp %17 : vector<128x128xf32>
    %cst_11 = arith.constant dense<0.000000e+00> : vector<128xf32>
    %19 = vector.multi_reduction <add>, %18, %cst_11 [1] : vector<128x128xf32> to vector<128xf32>
    %20 = vector.shape_cast %19 : vector<128xf32> to vector<128x1xf32>
    %21 = tpu.reciprocal %20 {approx = true} : vector<128x1xf32> -> vector<128x1xf32>
    %22 = vector.broadcast %21 : vector<128x1xf32> to vector<128x128xf32>
    %23 = arith.mulf %18, %22 : vector<128x128xf32>
    %24 = arith.truncf %23 : vector<128x128xf32> to vector<128x128xbf16>
    %c0_12 = arith.constant 0 : index
    %c0_13 = arith.constant 0 : index
    %c0_14 = arith.constant 0 : index
    %25 = vector.load %arg4[%c0_12, %c0_13, %c0_14] : memref<1x128x128xf32, #tpu.memory_space<vmem>>, vector<1x128x128xf32>
    %26 = vector.shape_cast %25 : vector<1x128x128xf32> to vector<128x128xf32>
    %27 = arith.truncf %26 : vector<128x128xf32> to vector<128x128xbf16>
    %cst_15 = arith.constant dense<0.000000e+00> : vector<128x128xf32>
    %28 = tpu.matmul %24, %27, %cst_15 {dimension_numbers = #tpu.dot_dimension_numbers<[1], [0], [0], [1], [0, 0, 1, 1], [], []>} : vector<128x128xbf16>, vector<128x128xbf16>, vector<128x128xf32> -> vector<128x128xf32>
    %c0_16 = arith.constant 0 : index
    %c0_17 = arith.constant 0 : index
    %c0_18 = arith.constant 0 : index
    %29 = vector.load %arg9[%c0_16, %c0_17, %c0_18] : memref<1x128x128xf32, #tpu.memory_space<vmem>>, vector<1x128x128xf32>
    %30 = vector.shape_cast %29 : vector<1x128x128xf32> to vector<128x128xf32>
    %31 = vector.shape_cast %23 : vector<128x128xf32> to vector<1x128x128xf32>
    tpu.vector_store %arg9[%c0_16, %c0_17, %c0_18], %31 {strides = array<i32>} : memref<1x128x128xf32, #tpu.memory_space<vmem>>, vector<1x128x128xf32>,
    %c0_19 = arith.constant 0 : index
    %c0_20 = arith.constant 0 : index
    %c0_21 = arith.constant 0 : index
    %32 = vector.load %arg10[%c0_19, %c0_20, %c0_21] : memref<1x128x128xf32, #tpu.memory_space<vmem>>, vector<1x128x128xf32>
    %33 = vector.shape_cast %32 : vector<1x128x128xf32> to vector<128x128xf32>
    %34 = vector.shape_cast %28 : vector<128x128xf32> to vector<1x128x128xf32>
    tpu.vector_store %arg10[%c0_19, %c0_20, %c0_21], %34 {strides = array<i32>} : memref<1x128x128xf32, #tpu.memory_space<vmem>>, vector<1x128x128xf32>,
    return
  }
  func.func @transform_0(%arg0: i32, %arg1: i32) -> (i32, i32, i32) {
    %c0_i32 = arith.constant 0 : i32
    %c0_i32_0 = arith.constant 0 : i32
    %c0_i32_1 = arith.constant 0 : i32
    return %arg0, %c0_i32, %c0_i32_0 : i32, i32, i32
  }
  func.func @transform_1(%arg0: i32, %arg1: i32) -> (i32, i32, i32) {
    %c0_i32 = arith.constant 0 : i32
    %c0_i32_0 = arith.constant 0 : i32
    return %arg0, %arg1, %c0_i32 : i32, i32, i32
  }
  func.func @transform_2(%arg0: i32, %arg1: i32) -> (i32, i32, i32) {
    %c0_i32 = arith.constant 0 : i32
    %c0_i32_0 = arith.constant 0 : i32
    %c0_i32_1 = arith.constant 0 : i32
    return %arg0, %c0_i32, %c0_i32_0 : i32, i32, i32
  }
  func.func @transform_3(%arg0: i32, %arg1: i32) -> (i32, i32) {
    %c0_i32 = arith.constant 0 : i32
    %c0_i32_0 = arith.constant 0 : i32
    %c0_i32_1 = arith.constant 0 : i32
    return %c0_i32, %c0_i32_0 : i32, i32
  }
  func.func @transform_4(%arg0: i32, %arg1: i32) -> (i32, i32) {
    %c0_i32 = arith.constant 0 : i32
    %c0_i32_0 = arith.constant 0 : i32
    %c0_i32_1 = arith.constant 0 : i32
    return %c0_i32, %c0_i32_0 : i32, i32
  }
  func.func @transform_5(%arg0: i32, %arg1: i32) -> (i32, i32) {
    %c0_i32 = arith.constant 0 : i32
    %c0_i32_0 = arith.constant 0 : i32
    %c0_i32_1 = arith.constant 0 : i32
    return %c0_i32, %c0_i32_0 : i32, i32
  }
  func.func @transform_6(%arg0: i32, %arg1: i32) -> (i32, i32) {
    %c0_i32 = arith.constant 0 : i32
    %c0_i32_0 = arith.constant 0 : i32
    %c0_i32_1 = arith.constant 0 : i32
    return %c0_i32, %c0_i32_0 : i32, i32
  }
  func.func @transform_7(%arg0: i32, %arg1: i32) -> (i32, i32, i32) {
    %c0_i32 = arith.constant 0 : i32
    %c0_i32_0 = arith.constant 0 : i32
    return %arg0, %arg1, %c0_i32 : i32, i32, i32
  }
  func.func @transform_8(%arg0: i32, %arg1: i32) -> (i32, i32, i32) {
    %c0_i32 = arith.constant 0 : i32
    %c0_i32_0 = arith.constant 0 : i32
    return %arg0, %arg1, %c0_i32 : i32, i32, i32
  }
}

</mosaic_0001>

<llo_original>
// kernel: tpu_custom_call.1
$region0: #{tpu_custom_call.1}
  #allocation0 [shape = 'u32[]', space=smem, size = 0x4, offset = 0x4, fixed_abs, tag = 'smem constant byte address 0x4 - core index']
  #allocation1 [shape = 'u32[144,128]{1,0:T(1,128)}', space=vmem, size = 0x12000, scoped, tag = 'internal scratch']
  #allocation2 [shape = 'bf16[128,64]{1,0:T(8,128)(2,1)}', space=vmem, size = 0x8000, scoped, tag = 'scratch operand']
  %s0 = inlined_call_operand.vmem [shape: f32[2,128,32], index: 0, kind: input, shape index: {}]
  %s1 = inlined_call_operand.vmem [shape: f32[2,256,32], index: 1, kind: input, shape index: {}]
  %s2 = inlined_call_operand.vmem [shape: f32[2,128,128], index: 2, kind: input, shape index: {}]
  %s3 = inlined_call_operand.vmem [shape: bf16[32,64], index: 3, kind: input, shape index: {}]
  %s4 = inlined_call_operand.vmem [shape: f32[1,64], index: 4, kind: input, shape index: {}]
  %s5 = inlined_call_operand.vmem [shape: bf16[32,64], index: 5, kind: input, shape index: {}]
  %s6 = inlined_call_operand.vmem [shape: f32[1,64], index: 6, kind: input, shape index: {}]
  %s7 = inlined_call_operand.hbm [shape: f32[2,256,128], index: 7, kind: output, shape index: {0}]
  %s8 = inlined_call_operand.hbm [shape: f32[2,256,128], index: 8, kind: output, shape index: {1}]
  %9 = xla_tuple %s7, %s8
  %s10 = sld [smem:[#allocation0]]
  $region73: #{tpu_custom_call.1} parent=0
    _
  %s12 = ssub.s32 1, %s10
  %s13 = scalar_select 0, %s12, %s10
  $region1: #{tpu_custom_call.1} parent=0
    #allocation3 [shape = 'u8[131072]{0}', space=vmem, size = 0x20000, scoped, tag = 'output window, operand 0']
    #allocation4 [shape = 's32[2]{0}', space=sflag, size = 0x8, scoped, tag = 'scoped memory for tpu_custom_call.1']
    #allocation5 [shape = 'u8[131072]{0}', space=vmem, size = 0x20000, scoped, tag = 'output window, operand 1']
    #allocation6 [shape = 's32[2]{0}', space=sflag, size = 0x8, scoped, tag = 'scoped memory for tpu_custom_call.1']
    %14 = vsyncpa [#allocation4], 0
    %s15 = scalar_lea.sflag [#allocation4], 1
    %16 = vsyncpa %s15, 0
    %17 = vsyncpa [#allocation6], 0
    %s18 = scalar_lea.sflag [#allocation6], 1
    %19 = vsyncpa %s18, 0
    loop: start=0, step=1, limit=6
    $region2: #{tpu_custom_call.1} parent=1 // loop_pre_header
      _
    $region3: #{tpu_custom_call.1} parent=1 // loop_header
      %s21 = sphi 0, %s25
      %p22 = scmp.ge.s32.totalorder %s21, 6
      %s28 = sphi 0, %s40
      %s29 = sphi 0, %s36
      %s30 = sphi 0, %s28
      %s31 = sphi 0, %s29
      %s32 = sphi 0, %s30
      %s33 = sphi 0, %s31
      %s43 = sphi 0, %s45
      %s46 = sphi 0, %s43
      %s47 = sphi 0, %s46
      %s63 = sphi 0, %s47
      %s71 = sphi 0, %s73
      %s74 = sphi 0, %s71
      %s75 = sphi 0, %s74
      %s91 = sphi 0, %s75
      %s97 = sphi 0, %s99
      %s100 = sphi 0, %s97
      %s101 = sphi 0, %s100
      %s117 = sphi 0, %s101
      %s121 = sphi 0, %s121
      %s123 = sphi 0, %s121
      %s124 = sphi 0, %s123
      %s138 = sphi 0, %s124
      %s142 = sphi 0, %s142
      %s144 = sphi 0, %s142
      %s145 = sphi 0, %s144
      %s159 = sphi 0, %s145
      %s163 = sphi 0, %s163
      %s165 = sphi 0, %s163
      %s166 = sphi 0, %s165
      %s180 = sphi 0, %s166
      %s184 = sphi 0, %s184
      %s186 = sphi 0, %s184
      %s187 = sphi 0, %s186
      %s201 = sphi 0, %s187
      %s209 = sphi 0, %s211
      %s212 = sphi 0, %s209
      %s213 = sphi 0, %s212
      %s229 = sphi 0, %s213
      %s237 = sphi 0, %s239
      %s240 = sphi 0, %s237
      %s241 = sphi 0, %s240
      %s257 = sphi 0, %s241
    $region4: #{tpu_custom_call.1} parent=1 // loop_header_branch
      %24 = sbr.rel (%p22) target = $region8
    $region5: #{tpu_custom_call.1} parent=1 // loop_body
      %s26 = ssub.s32 %s21, 1
      %s27 = ssub.s32 %s21, 2
      %s34 = sadd.s32 1, %s29
      %p35 = scmp.ge.s32.totalorder %s34, 2
      %s36 = scalar_select %p35, 0, %s34
      %s37 = sadd.s32 1, %s28
      %s38 = scalar_select %p35, %s37, %s28
      %p39 = scmp.ge.s32.totalorder %s38, 2
      %s40 = scalar_select %p39, 0, %s38
      %s41 = ssub.s32 %s28, %s40
      %p42 = scmp.eq.s32.totalorder %s41, 0
      %s44 = sadd.s32 %s43, 1
      %s45 = scalar_select %p42, %s43, %s44
      %p48 = pneg %p42
      %p49 = scmp.eq.s32.totalorder %s21, 3
      %p50 = por %p48, %p49
      %p51 = scmp.ne.s32.totalorder %s43, %s46
      %p52 = scmp.eq.s32.totalorder %s21, 0
      %p53 = por %p51, %p52
      %p54 = scmp.ne.s32.totalorder %s43, %s46
      %p55 = scmp.eq.s32.totalorder %s26, 3
      %p56 = por %p54, %p55
      %p57 = scmp.ne.s32.totalorder %s46, %s47
      %p58 = scmp.eq.s32.totalorder %s26, 0
      %p59 = por %p57, %p58
      %p60 = scmp.ne.s32.totalorder %s46, %s47
      %p61 = scmp.eq.s32.totalorder %s27, 3
      %p62 = por %p60, %p61
      %p64 = scmp.ne.s32.totalorder %s47, %s63
      %p65 = scmp.eq.s32.totalorder %s27, 0
      %p66 = por %p64, %p65
      %s67 = ssub.s32 %s28, %s40
      %s68 = ssub.s32 %s29, %s36
      %s69 = sor.u32 %s67, %s68
      %p70 = scmp.eq.s32.totalorder %s69, 0
      %s72 = sadd.s32 %s71, 1
      %s73 = scalar_select %p70, %s71, %s72
      %p76 = pneg %p70
      %p77 = scmp.eq.s32.totalorder %s21, 3
      %p78 = por %p76, %p77
      %p79 = scmp.ne.s32.totalorder %s71, %s74
      %p80 = scmp.eq.s32.totalorder %s21, 0
      %p81 = por %p79, %p80
      %p82 = scmp.ne.s32.totalorder %s71, %s74
      %p83 = scmp.eq.s32.totalorder %s26, 3
      %p84 = por %p82, %p83
      %p85 = scmp.ne.s32.totalorder %s74, %s75
      %p86 = scmp.eq.s32.totalorder %s26, 0
      %p87 = por %p85, %p86
      %p88 = scmp.ne.s32.totalorder %s74, %s75
      %p89 = scmp.eq.s32.totalorder %s27, 3
      %p90 = por %p88, %p89
      %p92 = scmp.ne.s32.totalorder %s75, %s91
      %p93 = scmp.eq.s32.totalorder %s27, 0
      %p94 = por %p92, %p93
      %s95 = ssub.s32 %s28, %s40
      %p96 = scmp.eq.s32.totalorder %s95, 0
      %s98 = sadd.s32 %s97, 1
      %s99 = scalar_select %p96, %s97, %s98
      %p102 = pneg %p96
      %p103 = scmp.eq.s32.totalorder %s21, 3
      %p104 = por %p102, %p103
      %p105 = scmp.ne.s32.totalorder %s97, %s100
      %p106 = scmp.eq.s32.totalorder %s21, 0
      %p107 = por %p105, %p106
      %p108 = scmp.ne.s32.totalorder %s97, %s100
      %p109 = scmp.eq.s32.totalorder %s26, 3
      %p110 = por %p108, %p109
      %p111 = scmp.ne.s32.totalorder %s100, %s101
      %p112 = scmp.eq.s32.totalorder %s26, 0
      %p113 = por %p111, %p112
      %p114 = scmp.ne.s32.totalorder %s100, %s101
      %p115 = scmp.eq.s32.totalorder %s27, 3
      %p116 = por %p114, %p115
      %p118 = scmp.ne.s32.totalorder %s101, %s117
      %p119 = scmp.eq.s32.totalorder %s27, 0
      %p120 = por %p118, %p119
      %s122 = sadd.s32 %s121, 1
      %p125 = scmp.eq.s32.totalorder %s21, 3
      %p126 = scmp.ne.s32.totalorder %s121, %s123
      %p127 = scmp.eq.s32.totalorder %s21, 0
      %p128 = por %p126, %p127
      %p129 = scmp.ne.s32.totalorder %s121, %s123
      %p130 = scmp.eq.s32.totalorder %s26, 3
      %p131 = por %p129, %p130
      %p132 = scmp.ne.s32.totalorder %s123, %s124
      %p133 = scmp.eq.s32.totalorder %s26, 0
      %p134 = por %p132, %p133
      %p135 = scmp.ne.s32.totalorder %s123, %s124
      %p136 = scmp.eq.s32.totalorder %s27, 3
      %p137 = por %p135, %p136
      %p139 = scmp.ne.s32.totalorder %s124, %s138
      %p140 = scmp.eq.s32.totalorder %s27, 0
      %p141 = por %p139, %p140
      %s143 = sadd.s32 %s142, 1
      %p146 = scmp.eq.s32.totalorder %s21, 3
      %p147 = scmp.ne.s32.totalorder %s142, %s144
      %p148 = scmp.eq.s32.totalorder %s21, 0
      %p149 = por %p147, %p148
      %p150 = scmp.ne.s32.totalorder %s142, %s144
      %p151 = scmp.eq.s32.totalorder %s26, 3
      %p152 = por %p150, %p151
      %p153 = scmp.ne.s32.totalorder %s144, %s145
      %p154 = scmp.eq.s32.totalorder %s26, 0
      %p155 = por %p153, %p154
      %p156 = scmp.ne.s32.totalorder %s144, %s145
      %p157 = scmp.eq.s32.totalorder %s27, 3
      %p158 = por %p156, %p157
      %p160 = scmp.ne.s32.totalorder %s145, %s159
      %p161 = scmp.eq.s32.totalorder %s27, 0
      %p162 = por %p160, %p161
      %s164 = sadd.s32 %s163, 1
      %p167 = scmp.eq.s32.totalorder %s21, 3
      %p168 = scmp.ne.s32.totalorder %s163, %s165
      %p169 = scmp.eq.s32.totalorder %s21, 0
      %p170 = por %p168, %p169
      %p171 = scmp.ne.s32.totalorder %s163, %s165
      %p172 = scmp.eq.s32.totalorder %s26, 3
      %p173 = por %p171, %p172
      %p174 = scmp.ne.s32.totalorder %s165, %s166
      %p175 = scmp.eq.s32.totalorder %s26, 0
      %p176 = por %p174, %p175
      %p177 = scmp.ne.s32.totalorder %s165, %s166
      %p178 = scmp.eq.s32.totalorder %s27, 3
      %p179 = por %p177, %p178
      %p181 = scmp.ne.s32.totalorder %s166, %s180
      %p182 = scmp.eq.s32.totalorder %s27, 0
      %p183 = por %p181, %p182
      %s185 = sadd.s32 %s184, 1
      %p188 = scmp.eq.s32.totalorder %s21, 3
      %p189 = scmp.ne.s32.totalorder %s184, %s186
      %p190 = scmp.eq.s32.totalorder %s21, 0
      %p191 = por %p189, %p190
      %p192 = scmp.ne.s32.totalorder %s184, %s186
      %p193 = scmp.eq.s32.totalorder %s26, 3
      %p194 = por %p192, %p193
      %p195 = scmp.ne.s32.totalorder %s186, %s187
      %p196 = scmp.eq.s32.totalorder %s26, 0
      %p197 = por %p195, %p196
      %p198 = scmp.ne.s32.totalorder %s186, %s187
      %p199 = scmp.eq.s32.totalorder %s27, 3
      %p200 = por %p198, %p199
      %p202 = scmp.ne.s32.totalorder %s187, %s201
      %p203 = scmp.eq.s32.totalorder %s27, 0
      %p204 = por %p202, %p203
      %s205 = ssub.s32 %s28, %s40
      %s206 = ssub.s32 %s29, %s36
      %s207 = sor.u32 %s205, %s206
      %p208 = scmp.eq.s32.totalorder %s207, 0
      %s210 = sadd.s32 %s209, 1
      %s211 = scalar_select %p208, %s209, %s210
      %p214 = pneg %p208
      %p215 = scmp.eq.s32.totalorder %s21, 3
      %p216 = por %p214, %p215
      %p217 = scmp.ne.s32.totalorder %s209, %s212
      %p218 = scmp.eq.s32.totalorder %s21, 0
      %p219 = por %p217, %p218
      %p220 = scmp.ne.s32.totalorder %s209, %s212
      %p221 = scmp.eq.s32.totalorder %s26, 3
      %p222 = por %p220, %p221
      %p223 = scmp.ne.s32.totalorder %s212, %s213
      %p224 = scmp.eq.s32.totalorder %s26, 0
      %p225 = por %p223, %p224
      %p226 = scmp.ne.s32.totalorder %s212, %s213
      %p227 = scmp.eq.s32.totalorder %s27, 3
      %p228 = por %p226, %p227
      %p230 = scmp.ne.s32.totalorder %s213, %s229
      %p231 = scmp.eq.s32.totalorder %s27, 0
      %p232 = por %p230, %p231
      %s233 = ssub.s32 %s28, %s40
      %s234 = ssub.s32 %s29, %s36
      %s235 = sor.u32 %s233, %s234
      %p236 = scmp.eq.s32.totalorder %s235, 0
      %s238 = sadd.s32 %s237, 1
      %s239 = scalar_select %p236, %s237, %s238
      %p242 = pneg %p236
      %p243 = scmp.eq.s32.totalorder %s21, 3
      %p244 = por %p242, %p243
      %p245 = scmp.ne.s32.totalorder %s237, %s240
      %p246 = scmp.eq.s32.totalorder %s21, 0
      %p247 = por %p245, %p246
      %p248 = scmp.ne.s32.totalorder %s237, %s240
      %p249 = scmp.eq.s32.totalorder %s26, 3
      %p250 = por %p248, %p249
      %p251 = scmp.ne.s32.totalorder %s240, %s241
      %p252 = scmp.eq.s32.totalorder %s26, 0
      %p253 = por %p251, %p252
      %p254 = scmp.ne.s32.totalorder %s240, %s241
      %p255 = scmp.eq.s32.totalorder %s27, 3
      %p256 = por %p254, %p255
      %p258 = scmp.ne.s32.totalorder %s241, %s257
      %p259 = scmp.eq.s32.totalorder %s27, 0
      %p260 = por %p258, %p259
      %p261 = scmp.le.s32.totalorder 1, %s21
      %p262 = scmp.lt.s32.totalorder %s21, 5
      %p263 = pnand %p261, %p262
      %p264 = pneg %p263
      // Predicated region
      $region9: #{tpu_custom_call.1} parent=5 // pred_check
        _
      $region10: #{tpu_custom_call.1} parent=5 // pred_check_branch
        %266 = sbr.rel (%p263) target = $region12
      $region11: #{tpu_custom_call.1} parent=5 // pred_region
        %s267 = ssub.s32 %s21, 1
        // Predicated region
        $region13: #{tpu_custom_call.1} parent=11 // pred_check
          %p268 = pneg %p134
        $region14: #{tpu_custom_call.1} parent=11 // pred_check_branch
          %270 = sbr.rel (%p268) target = $region16
        $region15: #{tpu_custom_call.1} parent=11 // pred_region
          _
        $region16: #{tpu_custom_call.1} parent=11 // pred_fallthru
          _
        // Predicated region
        $region17: #{tpu_custom_call.1} parent=11 // pred_check
          %p271 = pneg %p155
        $region18: #{tpu_custom_call.1} parent=11 // pred_check_branch
          %273 = sbr.rel (%p271) target = $region20
        $region19: #{tpu_custom_call.1} parent=11 // pred_region
          _
        $region20: #{tpu_custom_call.1} parent=11 // pred_fallthru
          _
        // Predicated region
        $region21: #{tpu_custom_call.1} parent=11 // pred_check
          %p274 = pneg %p176
        $region22: #{tpu_custom_call.1} parent=11 // pred_check_branch
          %276 = sbr.rel (%p274) target = $region24
        $region23: #{tpu_custom_call.1} parent=11 // pred_region
          _
        $region24: #{tpu_custom_call.1} parent=11 // pred_fallthru
          _
        // Predicated region
        $region25: #{tpu_custom_call.1} parent=11 // pred_check
          %p277 = pneg %p197
        $region26: #{tpu_custom_call.1} parent=11 // pred_check_branch
          %279 = sbr.rel (%p277) target = $region28
        $region27: #{tpu_custom_call.1} parent=11 // pred_region
          _
        $region28: #{tpu_custom_call.1} parent=11 // pred_fallthru
          _
      $region12: #{tpu_custom_call.1} parent=5 // pred_fallthru
        _
      %p280 = scmp.lt.s32.totalorder %s21, 4
      // Predicated region
      $region29: #{tpu_custom_call.1} parent=5 // pred_check
        %p281 = pneg %p280
      $region30: #{tpu_custom_call.1} parent=5 // pred_check_branch
        %283 = sbr.rel (%p281) target = $region32
      $region31: #{tpu_custom_call.1} parent=5 // pred_region
        // Predicated region
        $region33: #{tpu_custom_call.1} parent=31 // pred_check
          %p284 = pneg %p53
        $region34: #{tpu_custom_call.1} parent=31 // pred_check_branch
          %286 = sbr.rel (%p284) target = $region36
        $region35: #{tpu_custom_call.1} parent=31 // pred_region
          %p287 = scmp.lt.s32.totalorder %s28, 1
          %s288 = scalar_select %p287, %s28, 1
          %s289 = smul.addr %s288, 16
          %s290 = smul.addr %s289, 8
          %s291 = scalar_lea.vmem %s0, %s290
        $region36: #{tpu_custom_call.1} parent=31 // pred_fallthru
          _
        // Predicated region
        $region37: #{tpu_custom_call.1} parent=31 // pred_check
          %p292 = pneg %p81
        $region38: #{tpu_custom_call.1} parent=31 // pred_check_branch
          %294 = sbr.rel (%p292) target = $region40
        $region39: #{tpu_custom_call.1} parent=31 // pred_region
          %s295 = smul.u32 16, %s29
          %p296 = scmp.lt.s32.totalorder %s28, 1
          %s297 = scalar_select %p296, %s28, 1
          %p298 = scmp.lt.s32.totalorder %s295, 31
          %s299 = scalar_select %p298, %s295, 31
          %s300 = smul.addr %s297, 32
          %s301 = sadd.s32 %s299, %s300
          %s302 = smul.addr %s301, 8
          %s303 = scalar_lea.vmem %s1, %s302
          %s304 = smul.u32 16, %s29
        $region40: #{tpu_custom_call.1} parent=31 // pred_fallthru
          _
        // Predicated region
        $region41: #{tpu_custom_call.1} parent=31 // pred_check
          %p305 = pneg %p107
        $region42: #{tpu_custom_call.1} parent=31 // pred_check_branch
          %307 = sbr.rel (%p305) target = $region44
        $region43: #{tpu_custom_call.1} parent=31 // pred_region
          %p308 = scmp.lt.s32.totalorder %s28, 1
          %s309 = scalar_select %p308, %s28, 1
          %s310 = smul.addr %s309, 16
          %s311 = smul.addr %s310, 8
          %s312 = scalar_lea.vmem %s2, %s311
        $region44: #{tpu_custom_call.1} parent=31 // pred_fallthru
          _
      $region32: #{tpu_custom_call.1} parent=5 // pred_fallthru
        _
      %p313 = scmp.le.s32.totalorder 1, %s21
      %p314 = scmp.lt.s32.totalorder %s21, 5
      %p315 = pnand %p313, %p314
      %p316 = pneg %p315
      // Predicated region
      $region45: #{tpu_custom_call.1} parent=5 // pred_check
        _
      $region46: #{tpu_custom_call.1} parent=5 // pred_check_branch
        %318 = sbr.rel (%p315) target = $region48
      $region47: #{tpu_custom_call.1} parent=5 // pred_region
        %s319 = ssub.s32 %s21, 1
        %p320 = scmp.lt.s32.totalorder %s30, 1
        %s321 = scalar_select %p320, %s30, 1
        %s322 = smul.addr %s321, 16
        %s323 = smul.addr %s322, 8
        %s324 = scalar_lea.vmem %s0, %s323
        %p325 = pneg %p59
        %p326 = pneg %p56
        %s327 = smul.u32 16, %s31
        %p328 = scmp.lt.s32.totalorder %s30, 1
        %s329 = scalar_select %p328, %s30, 1
        %p330 = scmp.lt.s32.totalorder %s327, 31
        %s331 = scalar_select %p330, %s327, 31
        %s332 = smul.addr %s329, 32
        %s333 = sadd.s32 %s331, %s332
        %s334 = smul.addr %s333, 8
        %s335 = scalar_lea.vmem %s1, %s334
        %p336 = pneg %p87
        %p337 = pneg %p84
        %p338 = scmp.lt.s32.totalorder %s30, 1
        %s339 = scalar_select %p338, %s30, 1
        %s340 = smul.addr %s339, 16
        %s341 = smul.addr %s340, 8
        %s342 = scalar_lea.vmem %s2, %s341
        %p343 = pneg %p113
        %p344 = pneg %p110
        %p345 = pneg %p134
        %p346 = pneg %p131
        %p347 = pneg %p155
        %p348 = pneg %p152
        %p349 = pneg %p176
        %p350 = pneg %p173
        %p351 = pneg %p197
        %p352 = pneg %p194
        %p353 = pneg %p225
        %p354 = pneg %p222
        %s355 = sand.u32 %s212, 1
        %s356 = scalar_lea.sflag [#allocation4], %s355
        %s357 = sand.u32 %s212, 1
        %s358 = smul.addr %s357, 128
        %s359 = scalar_lea.vmem [#allocation3], %s358
        %p360 = pneg %p253
        %p361 = pneg %p250
        %s362 = sand.u32 %s240, 1
        %s363 = scalar_lea.sflag [#allocation6], %s362
        %s364 = sand.u32 %s240, 1
        %s365 = smul.addr %s364, 128
        %s366 = scalar_lea.vmem [#allocation5], %s365
        %p367 = scmp.lt.s32.totalorder %s30, 1
        %s368 = scalar_select %p367, %s30, 1
        %s369 = smul.addr %s368, 16
        %s370 = smul.addr %s369, 8
        %s371 = scalar_lea.vmem %s0, %s370
        %s372 = smul.u32 16, %s31
        %p373 = scmp.lt.s32.totalorder %s30, 1
        %s374 = scalar_select %p373, %s30, 1
        %p375 = scmp.lt.s32.totalorder %s372, 31
        %s376 = scalar_select %p375, %s372, 31
        %s377 = smul.addr %s374, 32
        %s378 = sadd.s32 %s376, %s377
        %s379 = smul.addr %s378, 8
        %s380 = scalar_lea.vmem %s1, %s379
        %s381 = smul.u32 16, %s31
        %p382 = scmp.lt.s32.totalorder %s30, 1
        %s383 = scalar_select %p382, %s30, 1
        %s384 = smul.addr %s383, 16
        %s385 = smul.addr %s384, 8
        %s386 = scalar_lea.vmem %s2, %s385
        %s387 = smul.u32 16, %s31
        %s388 = smul.u32 16, %s31
        %p390 = scmp.eq.s32.totalorder %s31, 0
        // Predicated region
        $region49: #{tpu_custom_call.1} parent=47 // pred_check
          %p391 = pneg %p390
        $region50: #{tpu_custom_call.1} parent=47 // pred_check_branch
          %393 = sbr.rel (%p391) target = $region52
        $region51: #{tpu_custom_call.1} parent=47 // pred_region
          %v394 = vld [vmem:[%s371] sm:$0xff]
          %v395 = vld [vmem:[%s371 + $0x8] sm:$0xff]
          %v396 = vld [vmem:[%s371 + $0x10] sm:$0xff]
          %v397 = vld [vmem:[%s371 + $0x18] sm:$0xff]
          %v398 = vld [vmem:[%s371 + $0x20] sm:$0xff]
          %v399 = vld [vmem:[%s371 + $0x28] sm:$0xff]
          %v400 = vld [vmem:[%s371 + $0x30] sm:$0xff]
          %v401 = vld [vmem:[%s371 + $0x38] sm:$0xff]
          %v402 = vld [vmem:[%s371 + $0x40] sm:$0xff]
          %v403 = vld [vmem:[%s371 + $0x48] sm:$0xff]
          %v404 = vld [vmem:[%s371 + $0x50] sm:$0xff]
          %v405 = vld [vmem:[%s371 + $0x58] sm:$0xff]
          %v406 = vld [vmem:[%s371 + $0x60] sm:$0xff]
          %v407 = vld [vmem:[%s371 + $0x68] sm:$0xff]
          %v408 = vld [vmem:[%s371 + $0x70] sm:$0xff]
          %v409 = vld [vmem:[%s371 + $0x78] sm:$0xff]
          %v410 = vpack.c.bf16 %v395, %v394
          %v411 = vpack.c.bf16 %v397, %v396
          %v412 = vpack.c.bf16 %v399, %v398
          %v413 = vpack.c.bf16 %v401, %v400
          %v414 = vpack.c.bf16 %v403, %v402
          %v415 = vpack.c.bf16 %v405, %v404
          %v416 = vpack.c.bf16 %v407, %v406
          %v417 = vpack.c.bf16 %v409, %v408
          %v418 = vld [vmem:[%s3] sm:$0xf]
          %v419 = vld [vmem:[%s3 + $0x4] sm:$0xf]
          %v420 = vld [vmem:[%s3 + $0x8] sm:$0xf]
          %v421 = vld [vmem:[%s3 + $0xc] sm:$0xf]
          %v422 = vld [vmem:[%s4] sm:$0x1]
          %v424 = vlaneseq
          %v425 = vshrl.u32 %v424, 7
          %v426 = vsub.s32 0, %v425
          %v427 = vrot.slane %v422, %v426
          %v433 = vunpack.c.l.b16 %v418
          %v434 = vunpack.c.l.b16 %v419
          %v435 = vunpack.c.l.b16 %v420
          %v436 = vunpack.c.l.b16 %v421
          %v437 = vpack.c.b16 %v434, %v433
          %v438 = vpack.c.b16 %v436, %v435
          %vm441 = vcmask 261120
          %v443 = vsel %vm441, %v410, 0
          %v446 = vsel %vm441, %v411, 0
          %v449 = vsel %vm441, %v412, 0
          %v452 = vsel %vm441, %v413, 0
          %v455 = vsel %vm441, %v414, 0
          %v458 = vsel %vm441, %v415, 0
          %v461 = vsel %vm441, %v416, 0
          %v464 = vsel %vm441, %v417, 0
          %466 = vmatprep.subr.bf16.mxu0 0
          %467 = vmatpush1.bf16.msra.mxu0 0
          %468 = vmatprep.subr.bf16.mxu0 0
          %469 = vmatpush1.bf16.msra.mxu0 0
          %470 = vmatprep.subr.bf16.mxu0 0
          %471 = vmatpush1.bf16.msra.mxu0 0
          %472 = vmatprep.subr.bf16.mxu0 0
          %473 = vmatpush1.bf16.msra.mxu0 0
          %474 = vmatprep.subr.bf16.mxu0 0
          %475 = vmatpush1.bf16.msra.mxu0 0
          %476 = vmatprep.subr.bf16.mxu0 0
          %477 = vmatpush1.bf16.msra.mxu0 0
          %478 = vmatprep.subr.bf16.mxu0 0
          %479 = vmatpush1.bf16.msra.mxu0 %v438
          %480 = vmatprep.subr.bf16.mxu0 0
          %481 = vmatpush1.bf16.msra.mxu0 %v437
          %482 = vmatprep.subr.bf16.mxu0 0
          %483 = vmatpush2.bf16.msra.mxu0 0
          %484 = vmatprep.subr.bf16.mxu0 0
          %485 = vmatpush2.bf16.msra.mxu0 0
          %486 = vmatprep.subr.bf16.mxu0 0
          %487 = vmatpush2.bf16.msra.mxu0 0
          %488 = vmatprep.subr.bf16.mxu0 0
          %489 = vmatpush2.bf16.msra.mxu0 0
          %490 = vmatprep.subr.bf16.mxu0 0
          %491 = vmatpush2.bf16.msra.mxu0 0
          %492 = vmatprep.subr.bf16.mxu0 0
          %493 = vmatpush2.bf16.msra.mxu0 0
          %494 = vmatprep.subr.bf16.mxu0 0
          %495 = vmatpush2.bf16.msra.mxu0 0
          %496 = vmatprep.subr.bf16.mxu0 0
          %497 = vmatpush2.bf16.msra.mxu0 0
          %498 = vmatprep.mubr.bf16.mxu0 0
          %499 = vmatmul.mubr.bf16.gmra.mxu0 %v443
          %v500 = vpop.f32.mrf.mxu0
          %v501 = vadd.f32 %v427, %v500
          %v502 = vpop.f32.mrf.mxu0
          %v503 = vpop.f32.mrf.mxu0
          %v504 = vadd.f32 %v427, %v503
          %v505 = vpop.f32.mrf.mxu0
          %506 = vmatprep.mubr.bf16.mxu0 0
          %507 = vmatmul.mubr.bf16.gmra.mxu0 %v446
          %v508 = vpop.f32.mrf.mxu0
          %v509 = vadd.f32 %v427, %v508
          %v510 = vpop.f32.mrf.mxu0
          %v511 = vpop.f32.mrf.mxu0
          %v512 = vadd.f32 %v427, %v511
          %v513 = vpop.f32.mrf.mxu0
          %514 = vmatprep.mubr.bf16.mxu0 0
          %515 = vmatmul.mubr.bf16.gmra.mxu0 %v449
          %v516 = vpop.f32.mrf.mxu0
          %v517 = vadd.f32 %v427, %v516
          %v518 = vpop.f32.mrf.mxu0
          %v519 = vpop.f32.mrf.mxu0
          %v520 = vadd.f32 %v427, %v519
          %v521 = vpop.f32.mrf.mxu0
          %522 = vmatprep.mubr.bf16.mxu0 0
          %523 = vmatmul.mubr.bf16.gmra.mxu0 %v452
          %v524 = vpop.f32.mrf.mxu0
          %v525 = vadd.f32 %v427, %v524
          %v526 = vpop.f32.mrf.mxu0
          %v527 = vpop.f32.mrf.mxu0
          %v528 = vadd.f32 %v427, %v527
          %v529 = vpop.f32.mrf.mxu0
          %530 = vmatprep.mubr.bf16.mxu0 0
          %531 = vmatmul.mubr.bf16.gmra.mxu0 %v455
          %v532 = vpop.f32.mrf.mxu0
          %v533 = vadd.f32 %v427, %v532
          %v534 = vpop.f32.mrf.mxu0
          %v535 = vpop.f32.mrf.mxu0
          %v536 = vadd.f32 %v427, %v535
          %v537 = vpop.f32.mrf.mxu0
          %538 = vmatprep.mubr.bf16.mxu0 0
          %539 = vmatmul.mubr.bf16.gmra.mxu0 %v458
          %v540 = vpop.f32.mrf.mxu0
          %v541 = vadd.f32 %v427, %v540
          %v542 = vpop.f32.mrf.mxu0
          %v543 = vpop.f32.mrf.mxu0
          %v544 = vadd.f32 %v427, %v543
          %v545 = vpop.f32.mrf.mxu0
          %546 = vmatprep.mubr.bf16.mxu0 0
          %547 = vmatmul.mubr.bf16.gmra.mxu0 %v461
          %v548 = vpop.f32.mrf.mxu0
          %v549 = vadd.f32 %v427, %v548
          %v550 = vpop.f32.mrf.mxu0
          %v551 = vpop.f32.mrf.mxu0
          %v552 = vadd.f32 %v427, %v551
          %v553 = vpop.f32.mrf.mxu0
          %554 = vmatprep.mubr.bf16.mxu0 0
          %555 = vmatmul.mubr.bf16.gmra.mxu0 %v464
          %v556 = vpop.f32.mrf.mxu0
          %v557 = vadd.f32 %v427, %v556
          %v558 = vpop.f32.mrf.mxu0
          %v559 = vpop.f32.mrf.mxu0
          %v560 = vadd.f32 %v427, %v559
          %v561 = vpop.f32.mrf.mxu0
          %562 = vdwg.mxu0
          %v563 = vmul.f32 %v501, 0.125
          %v564 = vmul.f32 %v504, 0.125
          %v565 = vmul.f32 %v509, 0.125
          %v566 = vmul.f32 %v512, 0.125
          %v567 = vmul.f32 %v517, 0.125
          %v568 = vmul.f32 %v520, 0.125
          %v569 = vmul.f32 %v525, 0.125
          %v570 = vmul.f32 %v528, 0.125
          %v571 = vmul.f32 %v533, 0.125
          %v572 = vmul.f32 %v536, 0.125
          %v573 = vmul.f32 %v541, 0.125
          %v574 = vmul.f32 %v544, 0.125
          %v575 = vmul.f32 %v549, 0.125
          %v576 = vmul.f32 %v552, 0.125
          %v577 = vmul.f32 %v557, 0.125
          %v578 = vmul.f32 %v560, 0.125
          %v579 = vpack.c.bf16 %v564, %v563
          %v580 = vpack.c.bf16 %v566, %v565
          %v581 = vpack.c.bf16 %v568, %v567
          %v582 = vpack.c.bf16 %v570, %v569
          %v583 = vpack.c.bf16 %v572, %v571
          %v584 = vpack.c.bf16 %v574, %v573
          %v585 = vpack.c.bf16 %v576, %v575
          %v586 = vpack.c.bf16 %v578, %v577
          %v595 = vunpack.c.l.b16 %v579
          %v596 = vunpack.c.h.b16 %v579
          %v597 = vunpack.c.l.b16 %v580
          %v598 = vunpack.c.h.b16 %v580
          %v599 = vunpack.c.l.b16 %v581
          %v600 = vunpack.c.h.b16 %v581
          %v601 = vunpack.c.l.b16 %v582
          %v602 = vunpack.c.h.b16 %v582
          %v603 = vunpack.c.l.b16 %v583
          %v604 = vunpack.c.h.b16 %v583
          %v605 = vunpack.c.l.b16 %v584
          %v606 = vunpack.c.h.b16 %v584
          %v607 = vunpack.c.l.b16 %v585
          %v608 = vunpack.c.h.b16 %v585
          %v609 = vunpack.c.l.b16 %v586
          %v610 = vunpack.c.h.b16 %v586
          %v611 = vpack.c.b16 %v595, %v595
          %v612 = vpack.c.b16 %v596, %v596
          %v613 = vpack.c.b16 %v597, %v597
          %v614 = vpack.c.b16 %v598, %v598
          %v615 = vpack.c.b16 %v599, %v599
          %v616 = vpack.c.b16 %v600, %v600
          %v617 = vpack.c.b16 %v601, %v601
          %v618 = vpack.c.b16 %v602, %v602
          %v619 = vpack.c.b16 %v603, %v603
          %v620 = vpack.c.b16 %v604, %v604
          %v621 = vpack.c.b16 %v605, %v605
          %v622 = vpack.c.b16 %v606, %v606
          %v623 = vpack.c.b16 %v607, %v607
          %v624 = vpack.c.b16 %v608, %v608
          %v625 = vpack.c.b16 %v609, %v609
          %v626 = vpack.c.b16 %v610, %v610
          %vm643 = vcmask 519168
          %644 = vst.msk [vmem:[#allocation2] sm:$0xf] %vm643, %v611
          %645 = vst.msk [vmem:[#allocation2 + $0x4] sm:$0xf] %vm643, %v612
          %646 = vst.msk [vmem:[#allocation2 + $0x8] sm:$0xf] %vm643, %v613
          %647 = vst.msk [vmem:[#allocation2 + $0xc] sm:$0xf] %vm643, %v614
          %648 = vst.msk [vmem:[#allocation2 + $0x10] sm:$0xf] %vm643, %v615
          %649 = vst.msk [vmem:[#allocation2 + $0x14] sm:$0xf] %vm643, %v616
          %650 = vst.msk [vmem:[#allocation2 + $0x18] sm:$0xf] %vm643, %v617
          %651 = vst.msk [vmem:[#allocation2 + $0x1c] sm:$0xf] %vm643, %v618
          %652 = vst.msk [vmem:[#allocation2 + $0x20] sm:$0xf] %vm643, %v619
          %653 = vst.msk [vmem:[#allocation2 + $0x24] sm:$0xf] %vm643, %v620
          %654 = vst.msk [vmem:[#allocation2 + $0x28] sm:$0xf] %vm643, %v621
          %655 = vst.msk [vmem:[#allocation2 + $0x2c] sm:$0xf] %vm643, %v622
          %656 = vst.msk [vmem:[#allocation2 + $0x30] sm:$0xf] %vm643, %v623
          %657 = vst.msk [vmem:[#allocation2 + $0x34] sm:$0xf] %vm643, %v624
          %658 = vst.msk [vmem:[#allocation2 + $0x38] sm:$0xf] %vm643, %v625
          %659 = vst.msk [vmem:[#allocation2 + $0x3c] sm:$0xf] %vm643, %v626
        $region52: #{tpu_custom_call.1} parent=47 // pred_fallthru
          _
        %v660 = vld [vmem:[%s380] sm:$0xff]
        %v661 = vld [vmem:[%s380 + $0x8] sm:$0xff]
        %v662 = vld [vmem:[%s380 + $0x10] sm:$0xff]
        %v663 = vld [vmem:[%s380 + $0x18] sm:$0xff]
        %v664 = vld [vmem:[%s380 + $0x20] sm:$0xff]
        %v665 = vld [vmem:[%s380 + $0x28] sm:$0xff]
        %v666 = vld [vmem:[%s380 + $0x30] sm:$0xff]
        %v667 = vld [vmem:[%s380 + $0x38] sm:$0xff]
        %v668 = vld [vmem:[%s380 + $0x40] sm:$0xff]
        %v669 = vld [vmem:[%s380 + $0x48] sm:$0xff]
        %v670 = vld [vmem:[%s380 + $0x50] sm:$0xff]
        %v671 = vld [vmem:[%s380 + $0x58] sm:$0xff]
        %v672 = vld [vmem:[%s380 + $0x60] sm:$0xff]
        %v673 = vld [vmem:[%s380 + $0x68] sm:$0xff]
        %v674 = vld [vmem:[%s380 + $0x70] sm:$0xff]
        %v675 = vld [vmem:[%s380 + $0x78] sm:$0xff]
        %v676 = vpack.c.bf16 %v661, %v660
        %v677 = vpack.c.bf16 %v663, %v662
        %v678 = vpack.c.bf16 %v665, %v664
        %v679 = vpack.c.bf16 %v667, %v666
        %v680 = vpack.c.bf16 %v669, %v668
        %v681 = vpack.c.bf16 %v671, %v670
        %v682 = vpack.c.bf16 %v673, %v672
        %v683 = vpack.c.bf16 %v675, %v674
        %v684 = vld [vmem:[%s5] sm:$0xf]
        %v685 = vld [vmem:[%s5 + $0x4] sm:$0xf]
        %v686 = vld [vmem:[%s5 + $0x8] sm:$0xf]
        %v687 = vld [vmem:[%s5 + $0xc] sm:$0xf]
        %v688 = vld [vmem:[%s6] sm:$0x1]
        %v690 = vlaneseq
        %v691 = vshrl.u32 %v690, 7
        %v692 = vsub.s32 0, %v691
        %v693 = vrot.slane %v688, %v692
        %v699 = vunpack.c.l.b16 %v684
        %v700 = vunpack.c.l.b16 %v685
        %v701 = vunpack.c.l.b16 %v686
        %v702 = vunpack.c.l.b16 %v687
        %v703 = vpack.c.b16 %v700, %v699
        %v704 = vpack.c.b16 %v702, %v701
        %vm707 = vcmask 261120
        %v709 = vsel %vm707, %v676, 0
        %v712 = vsel %vm707, %v677, 0
        %v715 = vsel %vm707, %v678, 0
        %v718 = vsel %vm707, %v679, 0
        %v721 = vsel %vm707, %v680, 0
        %v724 = vsel %vm707, %v681, 0
        %v727 = vsel %vm707, %v682, 0
        %v730 = vsel %vm707, %v683, 0
        %732 = vmatprep.subr.bf16.mxu0 0
        %733 = vmatpush1.bf16.msra.mxu0 0
        %734 = vmatprep.subr.bf16.mxu0 0
        %735 = vmatpush1.bf16.msra.mxu0 0
        %736 = vmatprep.subr.bf16.mxu0 0
        %737 = vmatpush1.bf16.msra.mxu0 0
        %738 = vmatprep.subr.bf16.mxu0 0
        %739 = vmatpush1.bf16.msra.mxu0 0
        %740 = vmatprep.subr.bf16.mxu0 0
        %741 = vmatpush1.bf16.msra.mxu0 0
        %742 = vmatprep.subr.bf16.mxu0 0
        %743 = vmatpush1.bf16.msra.mxu0 0
        %744 = vmatprep.subr.bf16.mxu0 0
        %745 = vmatpush1.bf16.msra.mxu0 %v704
        %746 = vmatprep.subr.bf16.mxu0 0
        %747 = vmatpush1.bf16.msra.mxu0 %v703
        %748 = vmatprep.subr.bf16.mxu0 0
        %749 = vmatpush2.bf16.msra.mxu0 0
        %750 = vmatprep.subr.bf16.mxu0 0
        %751 = vmatpush2.bf16.msra.mxu0 0
        %752 = vmatprep.subr.bf16.mxu0 0
        %753 = vmatpush2.bf16.msra.mxu0 0
        %754 = vmatprep.subr.bf16.mxu0 0
        %755 = vmatpush2.bf16.msra.mxu0 0
        %756 = vmatprep.subr.bf16.mxu0 0
        %757 = vmatpush2.bf16.msra.mxu0 0
        %758 = vmatprep.subr.bf16.mxu0 0
        %759 = vmatpush2.bf16.msra.mxu0 0
        %760 = vmatprep.subr.bf16.mxu0 0
        %761 = vmatpush2.bf16.msra.mxu0 0
        %762 = vmatprep.subr.bf16.mxu0 0
        %763 = vmatpush2.bf16.msra.mxu0 0
        %764 = vmatprep.mubr.bf16.mxu0 0
        %765 = vmatmul.mubr.bf16.gmra.mxu0 %v709
        %v766 = vpop.f32.mrf.mxu0
        %v767 = vadd.f32 %v693, %v766
        %v768 = vpop.f32.mrf.mxu0
        %v769 = vpop.f32.mrf.mxu0
        %v770 = vadd.f32 %v693, %v769
        %v771 = vpop.f32.mrf.mxu0
        %772 = vmatprep.mubr.bf16.mxu0 0
        %773 = vmatmul.mubr.bf16.gmra.mxu0 %v712
        %v774 = vpop.f32.mrf.mxu0
        %v775 = vadd.f32 %v693, %v774
        %v776 = vpop.f32.mrf.mxu0
        %v777 = vpop.f32.mrf.mxu0
        %v778 = vadd.f32 %v693, %v777
        %v779 = vpop.f32.mrf.mxu0
        %780 = vmatprep.mubr.bf16.mxu0 0
        %781 = vmatmul.mubr.bf16.gmra.mxu0 %v715
        %v782 = vpop.f32.mrf.mxu0
        %v783 = vadd.f32 %v693, %v782
        %v784 = vpop.f32.mrf.mxu0
        %v785 = vpop.f32.mrf.mxu0
        %v786 = vadd.f32 %v693, %v785
        %v787 = vpop.f32.mrf.mxu0
        %788 = vmatprep.mubr.bf16.mxu0 0
        %789 = vmatmul.mubr.bf16.gmra.mxu0 %v718
        %v790 = vpop.f32.mrf.mxu0
        %v791 = vadd.f32 %v693, %v790
        %v792 = vpop.f32.mrf.mxu0
        %v793 = vpop.f32.mrf.mxu0
        %v794 = vadd.f32 %v693, %v793
        %v795 = vpop.f32.mrf.mxu0
        %796 = vmatprep.mubr.bf16.mxu0 0
        %797 = vmatmul.mubr.bf16.gmra.mxu0 %v721
        %v798 = vpop.f32.mrf.mxu0
        %v799 = vadd.f32 %v693, %v798
        %v800 = vpop.f32.mrf.mxu0
        %v801 = vpop.f32.mrf.mxu0
        %v802 = vadd.f32 %v693, %v801
        %v803 = vpop.f32.mrf.mxu0
        %804 = vmatprep.mubr.bf16.mxu0 0
        %805 = vmatmul.mubr.bf16.gmra.mxu0 %v724
        %v806 = vpop.f32.mrf.mxu0
        %v807 = vadd.f32 %v693, %v806
        %v808 = vpop.f32.mrf.mxu0
        %v809 = vpop.f32.mrf.mxu0
        %v810 = vadd.f32 %v693, %v809
        %v811 = vpop.f32.mrf.mxu0
        %812 = vmatprep.mubr.bf16.mxu0 0
        %813 = vmatmul.mubr.bf16.gmra.mxu0 %v727
        %v814 = vpop.f32.mrf.mxu0
        %v815 = vadd.f32 %v693, %v814
        %v816 = vpop.f32.mrf.mxu0
        %v817 = vpop.f32.mrf.mxu0
        %v818 = vadd.f32 %v693, %v817
        %v819 = vpop.f32.mrf.mxu0
        %820 = vmatprep.mubr.bf16.mxu0 0
        %821 = vmatmul.mubr.bf16.gmra.mxu0 %v730
        %v822 = vpop.f32.mrf.mxu0
        %v823 = vadd.f32 %v693, %v822
        %v824 = vpop.f32.mrf.mxu0
        %v825 = vpop.f32.mrf.mxu0
        %v826 = vadd.f32 %v693, %v825
        %v827 = vpop.f32.mrf.mxu0
        %828 = vdwg.mxu0
        %v829 = vpack.c.bf16 %v770, %v767
        %v830 = vpack.c.bf16 %v778, %v775
        %v831 = vpack.c.bf16 %v786, %v783
        %v832 = vpack.c.bf16 %v794, %v791
        %v833 = vpack.c.bf16 %v802, %v799
        %v834 = vpack.c.bf16 %v810, %v807
        %v835 = vpack.c.bf16 %v818, %v815
        %v836 = vpack.c.bf16 %v826, %v823
        %v837 = vld [vmem:[#allocation2] sm:$0xf]
        %v838 = vld [vmem:[#allocation2 + $0x4] sm:$0xf]
        %v839 = vld [vmem:[#allocation2 + $0x8] sm:$0xf]
        %v840 = vld [vmem:[#allocation2 + $0xc] sm:$0xf]
        %v841 = vld [vmem:[#allocation2 + $0x10] sm:$0xf]
        %v842 = vld [vmem:[#allocation2 + $0x14] sm:$0xf]
        %v843 = vld [vmem:[#allocation2 + $0x18] sm:$0xf]
        %v844 = vld [vmem:[#allocation2 + $0x1c] sm:$0xf]
        %v845 = vld [vmem:[#allocation2 + $0x20] sm:$0xf]
        %v846 = vld [vmem:[#allocation2 + $0x24] sm:$0xf]
        %v847 = vld [vmem:[#allocation2 + $0x28] sm:$0xf]
        %v848 = vld [vmem:[#allocation2 + $0x2c] sm:$0xf]
        %v849 = vld [vmem:[#allocation2 + $0x30] sm:$0xf]
        %v850 = vld [vmem:[#allocation2 + $0x34] sm:$0xf]
        %v851 = vld [vmem:[#allocation2 + $0x38] sm:$0xf]
        %v852 = vld [vmem:[#allocation2 + $0x3c] sm:$0xf]
        %v869 = vunpack.c.l.b16 %v837
        %v870 = vunpack.c.l.b16 %v838
        %v871 = vunpack.c.l.b16 %v839
        %v872 = vunpack.c.l.b16 %v840
        %v873 = vunpack.c.l.b16 %v841
        %v874 = vunpack.c.l.b16 %v842
        %v875 = vunpack.c.l.b16 %v843
        %v876 = vunpack.c.l.b16 %v844
        %v877 = vunpack.c.l.b16 %v845
        %v878 = vunpack.c.l.b16 %v846
        %v879 = vunpack.c.l.b16 %v847
        %v880 = vunpack.c.l.b16 %v848
        %v881 = vunpack.c.l.b16 %v849
        %v882 = vunpack.c.l.b16 %v850
        %v883 = vunpack.c.l.b16 %v851
        %v884 = vunpack.c.l.b16 %v852
        %v885 = vpack.c.b16 %v870, %v869
        %v886 = vpack.c.b16 %v872, %v871
        %v887 = vpack.c.b16 %v874, %v873
        %v888 = vpack.c.b16 %v876, %v875
        %v889 = vpack.c.b16 %v878, %v877
        %v890 = vpack.c.b16 %v880, %v879
        %v891 = vpack.c.b16 %v882, %v881
        %v892 = vpack.c.b16 %v884, %v883
        %vm893 = vcmask 523264
        %v895 = vsel %vm893, %v829, 0
        %v898 = vsel %vm893, %v830, 0
        %v901 = vsel %vm893, %v831, 0
        %v904 = vsel %vm893, %v832, 0
        %v907 = vsel %vm893, %v833, 0
        %v910 = vsel %vm893, %v834, 0
        %v913 = vsel %vm893, %v835, 0
        %v916 = vsel %vm893, %v836, 0
        %v919 = vsel %vm893, %v885, 0
        %v922 = vsel %vm893, %v886, 0
        %v925 = vsel %vm893, %v887, 0
        %v928 = vsel %vm893, %v888, 0
        %v931 = vsel %vm893, %v889, 0
        %v934 = vsel %vm893, %v890, 0
        %v937 = vsel %vm893, %v891, 0
        %v940 = vsel %vm893, %v892, 0
        %942 = vmatprep.subr.bf16.mxu0 0
        %943 = vmatpush1.bf16.xpose.msra.mxu0 %v940
        %944 = vmatprep.subr.bf16.mxu0 0
        %945 = vmatpush1.bf16.xpose.msra.mxu0 %v937
        %946 = vmatprep.subr.bf16.mxu0 0
        %947 = vmatpush1.bf16.xpose.msra.mxu0 %v934
        %948 = vmatprep.subr.bf16.mxu0 0
        %949 = vmatpush1.bf16.xpose.msra.mxu0 %v931
        %950 = vmatprep.subr.bf16.mxu0 0
        %951 = vmatpush1.bf16.xpose.msra.mxu0 %v928
        %952 = vmatprep.subr.bf16.mxu0 0
        %953 = vmatpush1.bf16.xpose.msra.mxu0 %v925
        %954 = vmatprep.subr.bf16.mxu0 0
        %955 = vmatpush1.bf16.xpose.msra.mxu0 %v922
        %956 = vmatprep.subr.bf16.mxu0 0
        %957 = vmatpush1.bf16.xpose.msra.mxu0 %v919
        %958 = vmatprep.subr.bf16.mxu0 0
        %959 = vmatpush2.bf16.xpose.msra.mxu0 0
        %960 = vmatprep.subr.bf16.mxu0 0
        %961 = vmatpush2.bf16.xpose.msra.mxu0 0
        %962 = vmatprep.subr.bf16.mxu0 0
        %963 = vmatpush2.bf16.xpose.msra.mxu0 0
        %964 = vmatprep.subr.bf16.mxu0 0
        %965 = vmatpush2.bf16.xpose.msra.mxu0 0
        %966 = vmatprep.subr.bf16.mxu0 0
        %967 = vmatpush2.bf16.xpose.msra.mxu0 0
        %968 = vmatprep.subr.bf16.mxu0 0
        %969 = vmatpush2.bf16.xpose.msra.mxu0 0
        %970 = vmatprep.subr.bf16.mxu0 0
        %971 = vmatpush2.bf16.xpose.msra.mxu0 0
        %972 = vmatprep.subr.bf16.mxu0 0
        %973 = vmatpush2.bf16.xpose.msra.mxu0 0
        %974 = vmatprep.mubr.bf16.mxu0 0
        %975 = vmatmul.mubr.bf16.gmra.mxu0 %v895
        %v976 = vpop.f32.mrf.mxu0
        %v977 = vadd.f32 0.0, %v976
        %v978 = vpop.f32.mrf.mxu0
        %v979 = vpop.f32.mrf.mxu0
        %v980 = vadd.f32 0.0, %v979
        %v981 = vpop.f32.mrf.mxu0
        %982 = vmatprep.mubr.bf16.mxu0 0
        %983 = vmatmul.mubr.bf16.gmra.mxu0 %v898
        %v984 = vpop.f32.mrf.mxu0
        %v985 = vadd.f32 0.0, %v984
        %v986 = vpop.f32.mrf.mxu0
        %v987 = vpop.f32.mrf.mxu0
        %v988 = vadd.f32 0.0, %v987
        %v989 = vpop.f32.mrf.mxu0
        %990 = vmatprep.mubr.bf16.mxu0 0
        %991 = vmatmul.mubr.bf16.gmra.mxu0 %v901
        %v992 = vpop.f32.mrf.mxu0
        %v993 = vadd.f32 0.0, %v992
        %v994 = vpop.f32.mrf.mxu0
        %v995 = vpop.f32.mrf.mxu0
        %v996 = vadd.f32 0.0, %v995
        %v997 = vpop.f32.mrf.mxu0
        %998 = vmatprep.mubr.bf16.mxu0 0
        %999 = vmatmul.mubr.bf16.gmra.mxu0 %v904
        %v1000 = vpop.f32.mrf.mxu0
        %v1001 = vadd.f32 0.0, %v1000
        %v1002 = vpop.f32.mrf.mxu0
        %v1003 = vpop.f32.mrf.mxu0
        %v1004 = vadd.f32 0.0, %v1003
        %v1005 = vpop.f32.mrf.mxu0
        %1006 = vmatprep.mubr.bf16.mxu0 0
        %1007 = vmatmul.mubr.bf16.gmra.mxu0 %v907
        %v1008 = vpop.f32.mrf.mxu0
        %v1009 = vadd.f32 0.0, %v1008
        %v1010 = vpop.f32.mrf.mxu0
        %v1011 = vpop.f32.mrf.mxu0
        %v1012 = vadd.f32 0.0, %v1011
        %v1013 = vpop.f32.mrf.mxu0
        %1014 = vmatprep.mubr.bf16.mxu0 0
        %1015 = vmatmul.mubr.bf16.gmra.mxu0 %v910
        %v1016 = vpop.f32.mrf.mxu0
        %v1017 = vadd.f32 0.0, %v1016
        %v1018 = vpop.f32.mrf.mxu0
        %v1019 = vpop.f32.mrf.mxu0
        %v1020 = vadd.f32 0.0, %v1019
        %v1021 = vpop.f32.mrf.mxu0
        %1022 = vmatprep.mubr.bf16.mxu0 0
        %1023 = vmatmul.mubr.bf16.gmra.mxu0 %v913
        %v1024 = vpop.f32.mrf.mxu0
        %v1025 = vadd.f32 0.0, %v1024
        %v1026 = vpop.f32.mrf.mxu0
        %v1027 = vpop.f32.mrf.mxu0
        %v1028 = vadd.f32 0.0, %v1027
        %v1029 = vpop.f32.mrf.mxu0
        %1030 = vmatprep.mubr.bf16.mxu0 0
        %1031 = vmatmul.mubr.bf16.gmra.mxu0 %v916
        %v1032 = vpop.f32.mrf.mxu0
        %v1033 = vadd.f32 0.0, %v1032
        %v1034 = vpop.f32.mrf.mxu0
        %v1035 = vpop.f32.mrf.mxu0
        %v1036 = vadd.f32 0.0, %v1035
        %v1037 = vpop.f32.mrf.mxu0
        %1038 = vdwg.mxu0
        %1039 = vmax.xlane.f32.xlu0 %v977
        %v1040 = vpop.xlane.xlu0 %1039
        %1041 = vmax.xlane.f32.xlu0 %v980
        %v1042 = vpop.xlane.xlu0 %1041
        %1043 = vmax.xlane.f32.xlu0 %v985
        %v1044 = vpop.xlane.xlu0 %1043
        %1045 = vmax.xlane.f32.xlu0 %v988
        %v1046 = vpop.xlane.xlu0 %1045
        %1047 = vmax.xlane.f32.xlu0 %v993
        %v1048 = vpop.xlane.xlu0 %1047
        %1049 = vmax.xlane.f32.xlu0 %v996
        %v1050 = vpop.xlane.xlu0 %1049
        %1051 = vmax.xlane.f32.xlu0 %v1001
        %v1052 = vpop.xlane.xlu0 %1051
        %1053 = vmax.xlane.f32.xlu0 %v1004
        %v1054 = vpop.xlane.xlu0 %1053
        %1055 = vmax.xlane.f32.xlu0 %v1009
        %v1056 = vpop.xlane.xlu0 %1055
        %1057 = vmax.xlane.f32.xlu0 %v1012
        %v1058 = vpop.xlane.xlu0 %1057
        %1059 = vmax.xlane.f32.xlu0 %v1017
        %v1060 = vpop.xlane.xlu0 %1059
        %1061 = vmax.xlane.f32.xlu0 %v1020
        %v1062 = vpop.xlane.xlu0 %1061
        %1063 = vmax.xlane.f32.xlu0 %v1025
        %v1064 = vpop.xlane.xlu0 %1063
        %1065 = vmax.xlane.f32.xlu0 %v1028
        %v1066 = vpop.xlane.xlu0 %1065
        %1067 = vmax.xlane.f32.xlu0 %v1033
        %v1068 = vpop.xlane.xlu0 %1067
        %1069 = vmax.xlane.f32.xlu0 %v1036
        %v1070 = vpop.xlane.xlu0 %1069
        %v1071 = vsub.f32 %v977, %v1040
        %v1072 = vsub.f32 %v980, %v1042
        %v1073 = vsub.f32 %v985, %v1044
        %v1074 = vsub.f32 %v988, %v1046
        %v1075 = vsub.f32 %v993, %v1048
        %v1076 = vsub.f32 %v996, %v1050
        %v1077 = vsub.f32 %v1001, %v1052
        %v1078 = vsub.f32 %v1004, %v1054
        %v1079 = vsub.f32 %v1009, %v1056
        %v1080 = vsub.f32 %v1012, %v1058
        %v1081 = vsub.f32 %v1017, %v1060
        %v1082 = vsub.f32 %v1020, %v1062
        %v1083 = vsub.f32 %v1025, %v1064
        %v1084 = vsub.f32 %v1028, %v1066
        %v1085 = vsub.f32 %v1033, %v1068
        %v1086 = vsub.f32 %v1036, %v1070
        %v1087 = vmul.f32 %v1071, 1.442695
        %v1088 = vpow.pop %v1087
        %v1089 = vmul.f32 %v1072, 1.442695
        %v1090 = vpow.pop %v1089
        %v1091 = vmul.f32 %v1073, 1.442695
        %v1092 = vpow.pop %v1091
        %v1093 = vmul.f32 %v1074, 1.442695
        %v1094 = vpow.pop %v1093
        %v1095 = vmul.f32 %v1075, 1.442695
        %v1096 = vpow.pop %v1095
        %v1097 = vmul.f32 %v1076, 1.442695
        %v1098 = vpow.pop %v1097
        %v1099 = vmul.f32 %v1077, 1.442695
        %v1100 = vpow.pop %v1099
        %v1101 = vmul.f32 %v1078, 1.442695
        %v1102 = vpow.pop %v1101
        %v1103 = vmul.f32 %v1079, 1.442695
        %v1104 = vpow.pop %v1103
        %v1105 = vmul.f32 %v1080, 1.442695
        %v1106 = vpow.pop %v1105
        %v1107 = vmul.f32 %v1081, 1.442695
        %v1108 = vpow.pop %v1107
        %v1109 = vmul.f32 %v1082, 1.442695
        %v1110 = vpow.pop %v1109
        %v1111 = vmul.f32 %v1083, 1.442695
        %v1112 = vpow.pop %v1111
        %v1113 = vmul.f32 %v1084, 1.442695
        %v1114 = vpow.pop %v1113
        %v1115 = vmul.f32 %v1085, 1.442695
        %v1116 = vpow.pop %v1115
        %v1117 = vmul.f32 %v1086, 1.442695
        %v1118 = vpow.pop %v1117
        %1119 = vadd.xlane.f32.xlu0 %v1088
        %v1120 = vpop.xlane.xlu0 %1119
        %1121 = vadd.xlane.f32.xlu0 %v1090
        %v1122 = vpop.xlane.xlu0 %1121
        %1123 = vadd.xlane.f32.xlu0 %v1092
        %v1124 = vpop.xlane.xlu0 %1123
        %1125 = vadd.xlane.f32.xlu0 %v1094
        %v1126 = vpop.xlane.xlu0 %1125
        %1127 = vadd.xlane.f32.xlu0 %v1096
        %v1128 = vpop.xlane.xlu0 %1127
        %1129 = vadd.xlane.f32.xlu0 %v1098
        %v1130 = vpop.xlane.xlu0 %1129
        %1131 = vadd.xlane.f32.xlu0 %v1100
        %v1132 = vpop.xlane.xlu0 %1131
        %1133 = vadd.xlane.f32.xlu0 %v1102
        %v1134 = vpop.xlane.xlu0 %1133
        %1135 = vadd.xlane.f32.xlu0 %v1104
        %v1136 = vpop.xlane.xlu0 %1135
        %1137 = vadd.xlane.f32.xlu0 %v1106
        %v1138 = vpop.xlane.xlu0 %1137
        %1139 = vadd.xlane.f32.xlu0 %v1108
        %v1140 = vpop.xlane.xlu0 %1139
        %1141 = vadd.xlane.f32.xlu0 %v1110
        %v1142 = vpop.xlane.xlu0 %1141
        %1143 = vadd.xlane.f32.xlu0 %v1112
        %v1144 = vpop.xlane.xlu0 %1143
        %1145 = vadd.xlane.f32.xlu0 %v1114
        %v1146 = vpop.xlane.xlu0 %1145
        %1147 = vadd.xlane.f32.xlu0 %v1116
        %v1148 = vpop.xlane.xlu0 %1147
        %1149 = vadd.xlane.f32.xlu0 %v1118
        %v1150 = vpop.xlane.xlu0 %1149
        %v1151 = vrcp.pop %v1120
        %v1152 = vrcp.pop %v1122
        %v1153 = vrcp.pop %v1124
        %v1154 = vrcp.pop %v1126
        %v1155 = vrcp.pop %v1128
        %v1156 = vrcp.pop %v1130
        %v1157 = vrcp.pop %v1132
        %v1158 = vrcp.pop %v1134
        %v1159 = vrcp.pop %v1136
        %v1160 = vrcp.pop %v1138
        %v1161 = vrcp.pop %v1140
        %v1162 = vrcp.pop %v1142
        %v1163 = vrcp.pop %v1144
        %v1164 = vrcp.pop %v1146
        %v1165 = vrcp.pop %v1148
        %v1166 = vrcp.pop %v1150
        %v1167 = vmul.f32 %v1088, %v1151
        %v1168 = vmul.f32 %v1090, %v1152
        %v1169 = vmul.f32 %v1092, %v1153
        %v1170 = vmul.f32 %v1094, %v1154
        %v1171 = vmul.f32 %v1096, %v1155
        %v1172 = vmul.f32 %v1098, %v1156
        %v1173 = vmul.f32 %v1100, %v1157
        %v1174 = vmul.f32 %v1102, %v1158
        %v1175 = vmul.f32 %v1104, %v1159
        %v1176 = vmul.f32 %v1106, %v1160
        %v1177 = vmul.f32 %v1108, %v1161
        %v1178 = vmul.f32 %v1110, %v1162
        %v1179 = vmul.f32 %v1112, %v1163
        %v1180 = vmul.f32 %v1114, %v1164
        %v1181 = vmul.f32 %v1116, %v1165
        %v1182 = vmul.f32 %v1118, %v1166
        %v1183 = vpack.c.bf16 %v1168, %v1167
        %v1184 = vpack.c.bf16 %v1170, %v1169
        %v1185 = vpack.c.bf16 %v1172, %v1171
        %v1186 = vpack.c.bf16 %v1174, %v1173
        %v1187 = vpack.c.bf16 %v1176, %v1175
        %v1188 = vpack.c.bf16 %v1178, %v1177
        %v1189 = vpack.c.bf16 %v1180, %v1179
        %v1190 = vpack.c.bf16 %v1182, %v1181
        %v1191 = vld [vmem:[%s386] sm:$0xff]
        %v1192 = vld [vmem:[%s386 + $0x8] sm:$0xff]
        %v1193 = vld [vmem:[%s386 + $0x10] sm:$0xff]
        %v1194 = vld [vmem:[%s386 + $0x18] sm:$0xff]
        %v1195 = vld [vmem:[%s386 + $0x20] sm:$0xff]
        %v1196 = vld [vmem:[%s386 + $0x28] sm:$0xff]
        %v1197 = vld [vmem:[%s386 + $0x30] sm:$0xff]
        %v1198 = vld [vmem:[%s386 + $0x38] sm:$0xff]
        %v1199 = vld [vmem:[%s386 + $0x40] sm:$0xff]
        %v1200 = vld [vmem:[%s386 + $0x48] sm:$0xff]
        %v1201 = vld [vmem:[%s386 + $0x50] sm:$0xff]
        %v1202 = vld [vmem:[%s386 + $0x58] sm:$0xff]
        %v1203 = vld [vmem:[%s386 + $0x60] sm:$0xff]
        %v1204 = vld [vmem:[%s386 + $0x68] sm:$0xff]
        %v1205 = vld [vmem:[%s386 + $0x70] sm:$0xff]
        %v1206 = vld [vmem:[%s386 + $0x78] sm:$0xff]
        %v1207 = vpack.c.bf16 %v1192, %v1191
        %v1208 = vpack.c.bf16 %v1194, %v1193
        %v1209 = vpack.c.bf16 %v1196, %v1195
        %v1210 = vpack.c.bf16 %v1198, %v1197
        %v1211 = vpack.c.bf16 %v1200, %v1199
        %v1212 = vpack.c.bf16 %v1202, %v1201
        %v1213 = vpack.c.bf16 %v1204, %v1203
        %v1214 = vpack.c.bf16 %v1206, %v1205
        %1215 = vmatprep.subr.bf16.mxu0 0
        %1216 = vmatpush1.bf16.msra.mxu0 %v1214
        %1217 = vmatprep.subr.bf16.mxu0 0
        %1218 = vmatpush1.bf16.msra.mxu0 %v1213
        %1219 = vmatprep.subr.bf16.mxu0 0
        %1220 = vmatpush1.bf16.msra.mxu0 %v1212
        %1221 = vmatprep.subr.bf16.mxu0 0
        %1222 = vmatpush1.bf16.msra.mxu0 %v1211
        %1223 = vmatprep.subr.bf16.mxu0 0
        %1224 = vmatpush1.bf16.msra.mxu0 %v1210
        %1225 = vmatprep.subr.bf16.mxu0 0
        %1226 = vmatpush1.bf16.msra.mxu0 %v1209
        %1227 = vmatprep.subr.bf16.mxu0 0
        %1228 = vmatpush1.bf16.msra.mxu0 %v1208
        %1229 = vmatprep.subr.bf16.mxu0 0
        %1230 = vmatpush1.bf16.msra.mxu0 %v1207
        %1231 = vmatprep.subr.bf16.mxu0 0
        %1232 = vmatpush2.bf16.msra.mxu0 0
        %1233 = vmatprep.subr.bf16.mxu0 0
        %1234 = vmatpush2.bf16.msra.mxu0 0
        %1235 = vmatprep.subr.bf16.mxu0 0
        %1236 = vmatpush2.bf16.msra.mxu0 0
        %1237 = vmatprep.subr.bf16.mxu0 0
        %1238 = vmatpush2.bf16.msra.mxu0 0
        %1239 = vmatprep.subr.bf16.mxu0 0
        %1240 = vmatpush2.bf16.msra.mxu0 0
        %1241 = vmatprep.subr.bf16.mxu0 0
        %1242 = vmatpush2.bf16.msra.mxu0 0
        %1243 = vmatprep.subr.bf16.mxu0 0
        %1244 = vmatpush2.bf16.msra.mxu0 0
        %1245 = vmatprep.subr.bf16.mxu0 0
        %1246 = vmatpush2.bf16.msra.mxu0 0
        %1247 = vmatprep.mubr.bf16.mxu0 0
        %1248 = vmatmul.mubr.bf16.gmra.mxu0 %v1183
        %v1249 = vpop.f32.mrf.mxu0
        %v1250 = vadd.f32 0.0, %v1249
        %v1251 = vpop.f32.mrf.mxu0
        %v1252 = vpop.f32.mrf.mxu0
        %v1253 = vadd.f32 0.0, %v1252
        %v1254 = vpop.f32.mrf.mxu0
        %1255 = vmatprep.mubr.bf16.mxu0 0
        %1256 = vmatmul.mubr.bf16.gmra.mxu0 %v1184
        %v1257 = vpop.f32.mrf.mxu0
        %v1258 = vadd.f32 0.0, %v1257
        %v1259 = vpop.f32.mrf.mxu0
        %v1260 = vpop.f32.mrf.mxu0
        %v1261 = vadd.f32 0.0, %v1260
        %v1262 = vpop.f32.mrf.mxu0
        %1263 = vmatprep.mubr.bf16.mxu0 0
        %1264 = vmatmul.mubr.bf16.gmra.mxu0 %v1185
        %v1265 = vpop.f32.mrf.mxu0
        %v1266 = vadd.f32 0.0, %v1265
        %v1267 = vpop.f32.mrf.mxu0
        %v1268 = vpop.f32.mrf.mxu0
        %v1269 = vadd.f32 0.0, %v1268
        %v1270 = vpop.f32.mrf.mxu0
        %1271 = vmatprep.mubr.bf16.mxu0 0
        %1272 = vmatmul.mubr.bf16.gmra.mxu0 %v1186
        %v1273 = vpop.f32.mrf.mxu0
        %v1274 = vadd.f32 0.0, %v1273
        %v1275 = vpop.f32.mrf.mxu0
        %v1276 = vpop.f32.mrf.mxu0
        %v1277 = vadd.f32 0.0, %v1276
        %v1278 = vpop.f32.mrf.mxu0
        %1279 = vmatprep.mubr.bf16.mxu0 0
        %1280 = vmatmul.mubr.bf16.gmra.mxu0 %v1187
        %v1281 = vpop.f32.mrf.mxu0
        %v1282 = vadd.f32 0.0, %v1281
        %v1283 = vpop.f32.mrf.mxu0
        %v1284 = vpop.f32.mrf.mxu0
        %v1285 = vadd.f32 0.0, %v1284
        %v1286 = vpop.f32.mrf.mxu0
        %1287 = vmatprep.mubr.bf16.mxu0 0
        %1288 = vmatmul.mubr.bf16.gmra.mxu0 %v1188
        %v1289 = vpop.f32.mrf.mxu0
        %v1290 = vadd.f32 0.0, %v1289
        %v1291 = vpop.f32.mrf.mxu0
        %v1292 = vpop.f32.mrf.mxu0
        %v1293 = vadd.f32 0.0, %v1292
        %v1294 = vpop.f32.mrf.mxu0
        %1295 = vmatprep.mubr.bf16.mxu0 0
        %1296 = vmatmul.mubr.bf16.gmra.mxu0 %v1189
        %v1297 = vpop.f32.mrf.mxu0
        %v1298 = vadd.f32 0.0, %v1297
        %v1299 = vpop.f32.mrf.mxu0
        %v1300 = vpop.f32.mrf.mxu0
        %v1301 = vadd.f32 0.0, %v1300
        %v1302 = vpop.f32.mrf.mxu0
        %1303 = vmatprep.mubr.bf16.mxu0 0
        %1304 = vmatmul.mubr.bf16.gmra.mxu0 %v1190
        %v1305 = vpop.f32.mrf.mxu0
        %v1306 = vadd.f32 0.0, %v1305
        %v1307 = vpop.f32.mrf.mxu0
        %v1308 = vpop.f32.mrf.mxu0
        %v1309 = vadd.f32 0.0, %v1308
        %v1310 = vpop.f32.mrf.mxu0
        %1311 = vdwg.mxu0
        %1312 = vst [vmem:[%s359] sm:$0xff] %v1167
        %1313 = vst [vmem:[%s359 + $0x8] sm:$0xff] %v1168
        %1314 = vst [vmem:[%s359 + $0x10] sm:$0xff] %v1169
        %1315 = vst [vmem:[%s359 + $0x18] sm:$0xff] %v1170
        %1316 = vst [vmem:[%s359 + $0x20] sm:$0xff] %v1171
        %1317 = vst [vmem:[%s359 + $0x28] sm:$0xff] %v1172
        %1318 = vst [vmem:[%s359 + $0x30] sm:$0xff] %v1173
        %1319 = vst [vmem:[%s359 + $0x38] sm:$0xff] %v1174
        %1320 = vst [vmem:[%s359 + $0x40] sm:$0xff] %v1175
        %1321 = vst [vmem:[%s359 + $0x48] sm:$0xff] %v1176
        %1322 = vst [vmem:[%s359 + $0x50] sm:$0xff] %v1177
        %1323 = vst [vmem:[%s359 + $0x58] sm:$0xff] %v1178
        %1324 = vst [vmem:[%s359 + $0x60] sm:$0xff] %v1179
        %1325 = vst [vmem:[%s359 + $0x68] sm:$0xff] %v1180
        %1326 = vst [vmem:[%s359 + $0x70] sm:$0xff] %v1181
        %1327 = vst [vmem:[%s359 + $0x78] sm:$0xff] %v1182
        %1328 = vst [vmem:[%s366] sm:$0xff] %v1250
        %1329 = vst [vmem:[%s366 + $0x8] sm:$0xff] %v1253
        %1330 = vst [vmem:[%s366 + $0x10] sm:$0xff] %v1258
        %1331 = vst [vmem:[%s366 + $0x18] sm:$0xff] %v1261
        %1332 = vst [vmem:[%s366 + $0x20] sm:$0xff] %v1266
        %1333 = vst [vmem:[%s366 + $0x28] sm:$0xff] %v1269
        %1334 = vst [vmem:[%s366 + $0x30] sm:$0xff] %v1274
        %1335 = vst [vmem:[%s366 + $0x38] sm:$0xff] %v1277
        %1336 = vst [vmem:[%s366 + $0x40] sm:$0xff] %v1282
        %1337 = vst [vmem:[%s366 + $0x48] sm:$0xff] %v1285
        %1338 = vst [vmem:[%s366 + $0x50] sm:$0xff] %v1290
        %1339 = vst [vmem:[%s366 + $0x58] sm:$0xff] %v1293
        %1340 = vst [vmem:[%s366 + $0x60] sm:$0xff] %v1298
        %1341 = vst [vmem:[%s366 + $0x68] sm:$0xff] %v1301
        %1342 = vst [vmem:[%s366 + $0x70] sm:$0xff] %v1306
        %1343 = vst [vmem:[%s366 + $0x78] sm:$0xff] %v1309
        %s1344 = sand.u32 %s212, 1
        %s1345 = scalar_lea.sflag [#allocation4], %s1344
        %s1346 = sand.u32 %s212, 1
        %s1347 = smul.addr %s1346, 128
        %s1348 = scalar_lea.vmem [#allocation3], %s1347
        %s1349 = sand.u32 %s240, 1
        %s1350 = scalar_lea.sflag [#allocation6], %s1349
        %s1351 = sand.u32 %s240, 1
        %s1352 = smul.addr %s1351, 128
        %s1353 = scalar_lea.vmem [#allocation5], %s1352
        // Predicated region
        $region53: #{tpu_custom_call.1} parent=47 // pred_check
          %p1354 = pneg %p222
        $region54: #{tpu_custom_call.1} parent=47 // pred_check_branch
          %1356 = sbr.rel (%p1354) target = $region56
        $region55: #{tpu_custom_call.1} parent=47 // pred_region
          %s1357 = smul.u32 16, %s31
          %s1359 = ssub.s32 2048, 2048
          %1360 = vsyncadd %s1345, %s1359
          %s1361 = smul.addr %s30, 32
          %s1362 = sadd.s32 %s1357, %s1361
          %s1363 = smul.addr %s1362, 128
          %s1364 = scalar_lea.hbm %s7, %s1363
          %s1365 = sshll.u32 %s1348, 4
          %s1366 = int_to_ptr.vmem [resolvable:$true] %s1365
          %1371 = dma.vmem_to_hbm [thread:$0]  %s1366, 2048, %s1364, %s1345, 128, 128, 8
        $region56: #{tpu_custom_call.1} parent=47 // pred_fallthru
          _
        // Predicated region
        $region57: #{tpu_custom_call.1} parent=47 // pred_check
          %p1372 = pneg %p250
        $region58: #{tpu_custom_call.1} parent=47 // pred_check_branch
          %1374 = sbr.rel (%p1372) target = $region60
        $region59: #{tpu_custom_call.1} parent=47 // pred_region
          %s1375 = smul.u32 16, %s31
          %s1377 = ssub.s32 2048, 2048
          %1378 = vsyncadd %s1350, %s1377
          %s1379 = smul.addr %s30, 32
          %s1380 = sadd.s32 %s1375, %s1379
          %s1381 = smul.addr %s1380, 128
          %s1382 = scalar_lea.hbm %s8, %s1381
          %s1383 = sshll.u32 %s1353, 4
          %s1384 = int_to_ptr.vmem [resolvable:$true] %s1383
          %1389 = dma.vmem_to_hbm [thread:$0]  %s1384, 2048, %s1382, %s1350, 128, 128, 8
        $region60: #{tpu_custom_call.1} parent=47 // pred_fallthru
          _
      $region48: #{tpu_custom_call.1} parent=5 // pred_fallthru
        _
      %p1390 = scmp.le.s32.totalorder 2, %s21
      // Predicated region
      $region61: #{tpu_custom_call.1} parent=5 // pred_check
        %p1391 = pneg %p1390
      $region62: #{tpu_custom_call.1} parent=5 // pred_check_branch
        %1393 = sbr.rel (%p1391) target = $region64
      $region63: #{tpu_custom_call.1} parent=5 // pred_region
        %s1394 = ssub.s32 %s21, 2
        // Predicated region
        $region65: #{tpu_custom_call.1} parent=63 // pred_check
          %p1395 = pneg %p228
        $region66: #{tpu_custom_call.1} parent=63 // pred_check_branch
          %1397 = sbr.rel (%p1395) target = $region68
        $region67: #{tpu_custom_call.1} parent=63 // pred_region
          %s1398 = sand.u32 %s213, 1
          %s1399 = scalar_lea.sflag [#allocation4], %s1398
          %s1400 = sand.u32 %s213, 1
          %s1401 = smul.addr %s1400, 128
          %s1402 = scalar_lea.vmem [#allocation3], %s1401
          %1403 = dma.done %s1399, 2048
        $region68: #{tpu_custom_call.1} parent=63 // pred_fallthru
          _
        // Predicated region
        $region69: #{tpu_custom_call.1} parent=63 // pred_check
          %p1404 = pneg %p256
        $region70: #{tpu_custom_call.1} parent=63 // pred_check_branch
          %1406 = sbr.rel (%p1404) target = $region72
        $region71: #{tpu_custom_call.1} parent=63 // pred_region
          %s1407 = sand.u32 %s241, 1
          %s1408 = scalar_lea.sflag [#allocation6], %s1407
          %s1409 = sand.u32 %s241, 1
          %s1410 = smul.addr %s1409, 128
          %s1411 = scalar_lea.vmem [#allocation5], %s1410
          %1412 = dma.done %s1408, 2048
        $region72: #{tpu_custom_call.1} parent=63 // pred_fallthru
          _
      $region64: #{tpu_custom_call.1} parent=5 // pred_fallthru
        _
    $region6: #{tpu_custom_call.1} parent=1 // loop_footer
      %s25 = sadd.s32 1, %s21
    $region7: #{tpu_custom_call.1} parent=1 // loop_footer_branch
      %20 = sbr.rel target = $region3
    $region8: #{tpu_custom_call.1} parent=1 // loop_exit
      _
    %1413 = vsyncpa [#allocation4], 1
    %s1414 = scalar_lea.sflag [#allocation4], 1
    %1415 = vsyncpa %s1414, 1
    %1416 = vsyncpa [#allocation6], 1
    %s1417 = scalar_lea.sflag [#allocation6], 1
    %1418 = vsyncpa %s1417, 1

</llo_original>
